<compile_context>
chip_gen: v7x
topology: tpu7x:2x2x1
jax: 0.10.0
libtpu: 0.0.40
codegen_flags: <defaults>
</compile_context>

<pallas_src>
import functools
import math

import jax
import jax.numpy as jnp
from jax.experimental import pallas as pl
from jax.experimental.pallas import tpu as pltpu


# Large *finite* negative fill for masked logits.  A finite value keeps the online
# softmax NaN-free when an entire kv-tile is masked for some row: the bogus p=1
# contributions accumulated there are cancelled exactly by alpha = exp(_MASK_VALUE -
# m_real) underflowing to 0 on the first real tile.  Rows masked against EVERY key
# return a uniform average of V instead of torch's NaN (degenerate case).
_MASK_VALUE = -0.7 * float(jnp.finfo(jnp.float32).max)


def _dropout_keep(bh0, qi, ki, *, group, tq, tk, seed, rate):
    """Stateless keep-mask, factored into a per-row hash (G, tq, 1) and a
    per-column hash (1, 1, tk).  Only the combine (xor / and / cmp) runs at full
    (G, tq, tk) width, so the VALU cost is ~3 integer ops per score element."""
    def mix(x):
        x = x ^ (x >> 16)
        x = x * jnp.int32(-2048144789)      # 0x85EBCA6B
        x = x ^ (x >> 13)
        x = x * jnp.int32(-1028477387)      # 0xC2B2AE35
        x = x ^ (x >> 16)
        return x

    g = jax.lax.broadcasted_iota(jnp.int32, (group, tq, 1), 0)
    r = jax.lax.broadcasted_iota(jnp.int32, (group, tq, 1), 1)
    c = jax.lax.broadcasted_iota(jnp.int32, (1, 1, tk), 2)
    row_h = mix(((bh0 + g) * jnp.int32(-1640531527))          # 0x9E3779B9
                ^ ((qi * tq + r) * jnp.int32(668265263))      # 0x27D4EB2F
                ^ jnp.int32(seed))
    col_h = mix(((ki * tk + c) * jnp.int32(-2048144789))
                ^ jnp.int32((seed ^ 0x5851F42D) & 0x7FFFFFFF))

    x = (row_h ^ col_h) & jnp.int32(0x7FFFFFFF)               # full-tile xor + and
    thr = jnp.int32(min(int(round(rate * (1 << 31))), (1 << 31) - 1))
    return x >= thr                                           # P(keep) ~= 1 - rate


def _flash_sdpa_kernel(q_ref, k_ref, v_ref, mq_ref, mk_ref, o_ref,
                       m_sc, l_sc, acc_sc, qs_sc, *,
                       scale, dropout_rate, seed, group, tq, tk,
                       head_axis, compute_dtype):
    ki = pl.program_id(2)

    @pl.when(ki == 0)
    def _init():
        m_sc[...] = jnp.full_like(m_sc, -jnp.inf)
        l_sc[...] = jnp.zeros_like(l_sc)
        acc_sc[...] = jnp.zeros_like(acc_sc)
        # Scale + narrow q ONCE per q tile (not once per kv step): 1/sqrt(d) is
        # applied in f32, then cached in the MXU compute dtype in VMEM.
        qs_sc[...] = (q_ref[...].astype(jnp.float32) * scale).astype(compute_dtype)

    # QK^T for all `group` heads at once; narrow operands, f32 MXU accumulation.
    s = jnp.einsum("gqd,gkd->gqk", qs_sc[...], k_ref[...],
                   preferred_element_type=jnp.float32)          # (G, tq, tk)

    # torch outer-product mask: (i, j) masked iff mask[i] != 0 AND mask[j] != 0.
    masked = (mq_ref[...] != 0) & (mk_ref[...] != 0)            # (G,tq,1)&(G,1,tk)
    s = jnp.where(masked, _MASK_VALUE, s)

    # Online softmax update (f32 throughout).
    m_prev = m_sc[...]
    m_new = jnp.maximum(m_prev, jnp.max(s, axis=-1, keepdims=True))
    alpha = jnp.exp(m_prev - m_new)
    p = jnp.exp(s - m_new)
    l_sc[...] = alpha * l_sc[...] + jnp.sum(p, axis=-1, keepdims=True)

    if dropout_rate > 0.0:
        # Drop-after-softmax semantics: drop unnormalized p, normalize with the
        # un-dropped l, fuse the 1/(1-p) scale into the final per-row multiply.
        keep = _dropout_keep(pl.program_id(head_axis) * group,
                             pl.program_id(1 - head_axis), ki,
                             group=group, tq=tq, tk=tk,
                             seed=seed, rate=dropout_rate)
        p = jnp.where(keep, p, 0.0)

    acc_sc[...] = alpha * acc_sc[...] + jnp.einsum(
        "gqk,gkd->gqd", p.astype(compute_dtype), v_ref[...],
        preferred_element_type=jnp.float32)
    m_sc[...] = m_new

    @pl.when(ki == pl.num_programs(2) - 1)
    def _finalize():
        # Exact per-row reciprocal: one (G, tq, 1) divide, essentially free.  The
        # approximate (bf16) reciprocal was the source of the reference mismatch.
        inv = 1.0 / l_sc[...]
        if dropout_rate > 0.0:
            inv = inv * (1.0 / (1.0 - dropout_rate))
        o_ref[...] = (acc_sc[...] * inv).astype(o_ref.dtype)


def _pick_block(S, preferred):
    for t in preferred:
        if S >= t and S % t == 0:
            return t
    return S   # block dims equal to the full array dims are always legal


def _pick_head_group(BH, D):
    # Pack heads per grid step to amortize per-step overhead and fill compute width
    # for sub-128 head dims, while still dividing batch*heads.
    target = max(1, min(8, 128 // max(D, 1)))
    for g in range(min(target, BH), 0, -1):
        if BH % g == 0:
            return g
    return 1


def scaled_dot_product_attention(q, k, v, mask=None, *, dropout_rate=0.0, seed=0,
                                 block_q=None, block_k=None,
                                 compute_dtype=jnp.bfloat16):
    """softmax(QK^T / sqrt(D)) @ V with torch-style outer-product mask and dropout.

    q, k, v: (batch*heads, S, D).  mask: (batch, S); nonzero entries are masked out.
    compute_dtype: MXU operand dtype (bf16 default; use jnp.float32 for strict
    parity with an f32 reference).  Accumulation is always f32.
    """
    BH, S, D = q.shape
    assert k.shape == (BH, S, D) and v.shape == (BH, S, D)

    tq = block_q if block_q is not None else _pick_block(S, (512, 256, 128))
    tk = block_k if block_k is not None else _pick_block(S, (256, 128))
    assert S % tq == 0 and S % tk == 0, "block sizes must divide seq_len"
    G = _pick_head_group(BH, D)

    # K and V are re-streamed from HBM once per q tile; storing them in the narrow
    # compute dtype halves that (dominant) traffic and feeds the MXU natively.
    k_c = k.astype(compute_dtype)
    v_c = v.astype(compute_dtype)

    if mask is None:
        mask_bh = jnp.zeros((BH, S), dtype=jnp.int32)
    else:
        assert BH % mask.shape[0] == 0 and mask.shape[1] == S
        n_heads = BH // mask.shape[0]
        # head-major tiling matches torch's mask.repeat(n_heads, 1, 1, 1).view(...)
        mask_bh = jnp.tile(mask.astype(jnp.int32), (n_heads, 1))
    mask_q = mask_bh[:, :, None]    # (BH, S, 1): query-row mask
    mask_k = mask_bh[:, None, :]    # (BH, 1, S): key-column mask

    bh_groups, q_tiles, kv_tiles = BH // G, S // tq, S // tk

    # Lead with the larger independent axis so the leading "parallel" axis keeps
    # both TensorCores busy on megacore parts; kv reduction stays last/"arbitrary".
    head_leading = bh_groups >= q_tiles
    if head_leading:
        grid = (bh_groups, q_tiles, kv_tiles)
        head_axis = 0
        g_of = lambda a, b: a
        i_of = lambda a, b: b
    else:
        grid = (q_tiles, bh_groups, kv_tiles)
        head_axis = 1
        g_of = lambda a, b: b
        i_of = lambda a, b: a

    kernel = functools.partial(
        _flash_sdpa_kernel,
        scale=1.0 / math.sqrt(D),
        dropout_rate=float(dropout_rate),
        seed=int(seed) & 0x7FFFFFFF,
        group=G, tq=tq, tk=tk,
        head_axis=head_axis,
        compute_dtype=compute_dtype)

    q_isize = q.dtype.itemsize
    kv_isize = jnp.dtype(compute_dtype).itemsize
    cost = pl.CostEstimate(
        flops=int(4 * BH * S * S * D),                      # QK^T + PV
        transcendentals=int(BH * S * S),                    # exp
        bytes_accessed=int(
            q_isize * BH * S * D                            # Q read once
            + 2 * kv_isize * BH * S * D * q_tiles           # K, V re-streamed S/tq x
            + q_isize * BH * S * D                          # O written once
            + 4 * 2 * BH * S * q_tiles),                    # masks (tiny)
    )

    return pl.pallas_call(
        kernel,
        out_shape=jax.ShapeDtypeStruct((BH, S, D), q.dtype),
        grid_spec=pltpu.PrefetchScalarGridSpec(
            num_scalar_prefetch=0,
            grid=grid,
            in_specs=[
                pl.BlockSpec((G, tq, D), lambda a, b, j: (g_of(a, b), i_of(a, b), 0)),  # q
                pl.BlockSpec((G, tk, D), lambda a, b, j: (g_of(a, b), j, 0)),           # k
                pl.BlockSpec((G, tk, D), lambda a, b, j: (g_of(a, b), j, 0)),           # v
                pl.BlockSpec((G, tq, 1), lambda a, b, j: (g_of(a, b), i_of(a, b), 0)),  # row mask
                pl.BlockSpec((G, 1, tk), lambda a, b, j: (g_of(a, b), 0, j)),           # col mask
            ],
            out_specs=pl.BlockSpec((G, tq, D),
                                   lambda a, b, j: (g_of(a, b), i_of(a, b), 0)),
            scratch_shapes=[
                pltpu.VMEM((G, tq, 1), jnp.float32),     # running max  m
                pltpu.VMEM((G, tq, 1), jnp.float32),     # running sum  l
                pltpu.VMEM((G, tq, D), jnp.float32),     # output accumulator
                pltpu.VMEM((G, tq, D), compute_dtype),   # cached scaled q (per q tile)
            ],
        ),
        compiler_params=pltpu.CompilerParams(
            dimension_semantics=("parallel", "parallel", "arbitrary"),
            vmem_limit_bytes=48 * 1024 * 1024,   # above scoped defaults, < v7x physical
        ),
        cost_estimate=cost,
    )(q, k_c, v_c, mask_q, mask_k)


def _reference_sdpa(q, k, v, mask):
    """Pure-JAX f32 reference mirroring the PyTorch forward (dropout disabled)."""
    BH, S, D = q.shape
    attn = jnp.einsum("bqd,bkd->bqk", q, k) / math.sqrt(D)
    if mask is not None:
        n_heads = BH // mask.shape[0]
        m2 = (mask[:, :, None] * mask[:, None, :]) != 0
        m2 = jnp.tile(m2, (n_heads, 1, 1))
        attn = jnp.where(m2, -jnp.inf, attn)
    attn = jax.nn.softmax(attn, axis=-1)
    return jnp.einsum("bqk,bkd->bqd", attn, v)


if __name__ == "__main__":
    # Shapes implied by the module: (batch*heads, seq_len, head_dim).
    batch, n_heads, seq_len, head_dim = 2, 4, 8, 32
    BH = batch * n_heads

    key = jax.random.PRNGKey(0)
    kq, kk, kv_, km, krest = jax.random.split(key, 5)
    q = jax.random.normal(kq, (BH, seq_len, head_dim), dtype=jnp.float32)
    k = jax.random.normal(kk, (BH, seq_len, head_dim), dtype=jnp.float32)
    v = jax.random.normal(kv_, (BH, seq_len, head_dim), dtype=jnp.float32)

    # nonzero = masked out (torch masked_fill convention); keep token 0 unmasked so
    # no query row is masked against every key (torch would produce NaN there).
    mask = (jax.random.uniform(km, (batch, seq_len)) < 0.3).astype(jnp.int32)
    mask = mask.at[:, 0].set(0)

    ref = _reference_sdpa(q, k, v, mask)

    # 1) f32 compute path: strict parity with the f32 reference (exact reciprocal).
    out_f32 = jax.block_until_ready(
        scaled_dot_product_attention(q, k, v, mask, compute_dtype=jnp.float32))
    assert out_f32.shape == (BH, seq_len, head_dim)
    assert jnp.allclose(out_f32, ref, atol=2e-3, rtol=2e-3), "f32 masked mismatch"

    # 2) default bf16-MXU path (perf config); tolerance sized for bf16 operands.
    out_bf16 = jax.block_until_ready(scaled_dot_product_attention(q, k, v, mask))
    assert jnp.allclose(out_bf16, ref, atol=3e-2, rtol=3e-2), "bf16 masked mismatch"

    # 3) no-mask path.
    out_nm = jax.block_until_ready(
        scaled_dot_product_attention(q, k, v, None, compute_dtype=jnp.float32))
    assert jnp.allclose(out_nm, _reference_sdpa(q, k, v, None),
                        atol=2e-3, rtol=2e-3), "unmasked attention mismatch"

    # 4) multi-tile flash path, incl. a fully-masked LEADING kv tile (exercises the
    #    exp-underflow cancellation) and both grid-axis orderings.
    b2, h2, s2, d2 = 2, 2, 512, 64
    BH2 = b2 * h2
    kq2, kk2, kv2, km2 = jax.random.split(krest, 4)
    q2 = jax.random.normal(kq2, (BH2, s2, d2), dtype=jnp.float32)
    k2 = jax.random.normal(kk2, (BH2, s2, d2), dtype=jnp.float32)
    v2 = jax.random.normal(kv2, (BH2, s2, d2), dtype=jnp.float32)
    mask2 = (jax.random.uniform(km2, (b2, s2)) < 0.25).astype(jnp.int32)
    mask2 = mask2.at[0, :256].set(1)      # batch 0: leading kv tile(s) fully masked
    mask2 = mask2.at[:, 300].set(0)       # every row keeps at least one key
    ref2 = _reference_sdpa(q2, k2, v2, mask2)

    # 4a) default tiles (tq=512, tk=256) -> grid (BH/G, 1, 2), head axis leading.
    out2a = jax.block_until_ready(scaled_dot_product_attention(q2, k2, v2, mask2))
    assert jnp.allclose(out2a, ref2, atol=3e-2, rtol=3e-2), "flash default-tile mismatch"

    # 4b) small q tiles -> grid (4, 2, 4) with the q-tile axis leading (axis swap).
    out2b = jax.block_until_ready(
        scaled_dot_product_attention(q2, k2, v2, mask2, block_q=128, block_k=128,
                                     compute_dtype=jnp.float32))
    assert jnp.allclose(out2b, ref2, atol=2e-3, rtol=2e-3), "flash small-tile mismatch"

    # 5) training-mode dropout path (stateless factored hash RNG; values are
    #    RNG-stream dependent, so only shape / finiteness are checked).
    out_do = jax.block_until_ready(
        scaled_dot_product_attention(q, k, v, mask, dropout_rate=0.1, seed=123))
    assert out_do.shape == (BH, seq_len, head_dim)
    assert bool(jnp.all(jnp.isfinite(out_do)))

    print("KERNEL_OK")
</pallas_src>

<mosaic_0001>
module attributes {stable_mosaic.version = 11 : i64} {
  func.func @_flash_sdpa_kernel(%arg0: i32, %arg1: i32, %arg2: i32, %arg3: memref<4x8x32xf32, #tpu.memory_space<vmem>>, %arg4: memref<4x8x32xf32, #tpu.memory_space<vmem>>, %arg5: memref<4x8x32xf32, #tpu.memory_space<vmem>>, %arg6: memref<4x8x1xi32, #tpu.memory_space<vmem>>, %arg7: memref<4x1x8xi32, #tpu.memory_space<vmem>>, %arg8: memref<4x8x32xf32, #tpu.memory_space<vmem>>, %arg9: memref<4x8x1xf32, #tpu.memory_space<vmem>>, %arg10: memref<4x8x1xf32, #tpu.memory_space<vmem>>, %arg11: memref<4x8x32xf32, #tpu.memory_space<vmem>>, %arg12: memref<4x8x32xf32, #tpu.memory_space<vmem>>) attributes {dimension_semantics = [#tpu.dimension_semantics<parallel>, #tpu.dimension_semantics<parallel>, #tpu.dimension_semantics<arbitrary>], iteration_bounds = array<i64: 2, 1, 1>, scalar_prefetch = 0 : i64, scratch_operands = 4 : i64, tpu.core_type = #tpu.core_type<tc>, window_params = [{transform_indices = @transform_0, window_bounds = array<i64: 4, 8, 32>}, {transform_indices = @transform_1, window_bounds = array<i64: 4, 8, 32>}, {transform_indices = @transform_2, window_bounds = array<i64: 4, 8, 32>}, {transform_indices = @transform_3, window_bounds = array<i64: 4, 8, 1>}, {transform_indices = @transform_4, window_bounds = array<i64: 4, 1, 8>}, {transform_indices = @transform_5, window_bounds = array<i64: 4, 8, 32>}]} {
    %c0_i32 = arith.constant 0 : i32
    %0 = arith.cmpi eq, %arg2, %c0_i32 : i32
    %1 = arith.extui %0 : i1 to i32
    %c0_i32_0 = arith.constant 0 : i32
    %2 = arith.cmpi ne, %1, %c0_i32_0 : i32
    scf.if %2 {
      %cst_41 = arith.constant 0xFF800000 : f32
      %43 = vector.broadcast %cst_41 : f32 to vector<4x8x1xf32>
      %c0_42 = arith.constant 0 : index
      %c0_43 = arith.constant 0 : index
      %c0_44 = arith.constant 0 : index
      %44 = vector.load %arg9[%c0_42, %c0_43, %c0_44] : memref<4x8x1xf32, #tpu.memory_space<vmem>>, vector<4x8x1xf32>
      tpu.vector_store %arg9[%c0_42, %c0_43, %c0_44], %43 {strides = array<i32>} : memref<4x8x1xf32, #tpu.memory_space<vmem>>, vector<4x8x1xf32>,
      %cst_45 = arith.constant 0.000000e+00 : f32
      %45 = vector.broadcast %cst_45 : f32 to vector<4x8x1xf32>
      %c0_46 = arith.constant 0 : index
      %c0_47 = arith.constant 0 : index
      %c0_48 = arith.constant 0 : index
      %46 = vector.load %arg10[%c0_46, %c0_47, %c0_48] : memref<4x8x1xf32, #tpu.memory_space<vmem>>, vector<4x8x1xf32>
      tpu.vector_store %arg10[%c0_46, %c0_47, %c0_48], %45 {strides = array<i32>} : memref<4x8x1xf32, #tpu.memory_space<vmem>>, vector<4x8x1xf32>,
      %cst_49 = arith.constant 0.000000e+00 : f32
      %47 = vector.broadcast %cst_49 : f32 to vector<4x8x32xf32>
      %c0_50 = arith.constant 0 : index
      %c0_51 = arith.constant 0 : index
      %c0_52 = arith.constant 0 : index
      %48 = vector.load %arg11[%c0_50, %c0_51, %c0_52] : memref<4x8x32xf32, #tpu.memory_space<vmem>>, vector<4x8x32xf32>
      tpu.vector_store %arg11[%c0_50, %c0_51, %c0_52], %47 {strides = array<i32>} : memref<4x8x32xf32, #tpu.memory_space<vmem>>, vector<4x8x32xf32>,
      %c0_53 = arith.constant 0 : index
      %c0_54 = arith.constant 0 : index
      %c0_55 = arith.constant 0 : index
      %49 = vector.load %arg3[%c0_53, %c0_54, %c0_55] : memref<4x8x32xf32, #tpu.memory_space<vmem>>, vector<4x8x32xf32>
      %cst_56 = arith.constant 0.176776692 : f32
      %50 = vector.broadcast %cst_56 : f32 to vector<4x8x32xf32>
      %51 = arith.mulf %49, %50 : vector<4x8x32xf32>
      %c0_57 = arith.constant 0 : index
      %c0_58 = arith.constant 0 : index
      %c0_59 = arith.constant 0 : index
      %52 = vector.load %arg12[%c0_57, %c0_58, %c0_59] : memref<4x8x32xf32, #tpu.memory_space<vmem>>, vector<4x8x32xf32>
      tpu.vector_store %arg12[%c0_57, %c0_58, %c0_59], %51 {strides = array<i32>} : memref<4x8x32xf32, #tpu.memory_space<vmem>>, vector<4x8x32xf32>,
    } else {
    }
    %c0 = arith.constant 0 : index
    %c0_1 = arith.constant 0 : index
    %c0_2 = arith.constant 0 : index
    %3 = vector.load %arg12[%c0, %c0_1, %c0_2] : memref<4x8x32xf32, #tpu.memory_space<vmem>>, vector<4x8x32xf32>
    %c0_3 = arith.constant 0 : index
    %c0_4 = arith.constant 0 : index
    %c0_5 = arith.constant 0 : index
    %4 = vector.load %arg4[%c0_3, %c0_4, %c0_5] : memref<4x8x32xf32, #tpu.memory_space<vmem>>, vector<4x8x32xf32>
    "tpu.trace_start"() <{level = 10 : i32, message = "gqd,gkd->gqk"}> : () -> ()
    %cst = arith.constant dense<0.000000e+00> : vector<4x8x8xf32>
    %5 = tpu.matmul %3, %4, %cst {dimension_numbers = #tpu.dot_dimension_numbers<[2], [2], [1], [1], [0, 0, 0, 1, 1, 1], [0], [0]>} : vector<4x8x32xf32>, vector<4x8x32xf32>, vector<4x8x8xf32> -> vector<4x8x8xf32>
    "tpu.trace_stop"() : () -> ()
    %c0_6 = arith.constant 0 : index
    %c0_7 = arith.constant 0 : index
    %c0_8 = arith.constant 0 : index
    %6 = vector.load %arg6[%c0_6, %c0_7, %c0_8] : memref<4x8x1xi32, #tpu.memory_space<vmem>>, vector<4x8x1xi32>
    %c0_i32_9 = arith.constant 0 : i32
    %7 = vector.broadcast %c0_i32_9 : i32 to vector<4x8x1xi32>
    %8 = arith.cmpi ne, %6, %7 : vector<4x8x1xi32>
    %c0_10 = arith.constant 0 : index
    %c0_11 = arith.constant 0 : index
    %c0_12 = arith.constant 0 : index
    %9 = vector.load %arg7[%c0_10, %c0_11, %c0_12] : memref<4x1x8xi32, #tpu.memory_space<vmem>>, vector<4x1x8xi32>
    %c0_i32_13 = arith.constant 0 : i32
    %10 = vector.broadcast %c0_i32_13 : i32 to vector<4x1x8xi32>
    %11 = arith.cmpi ne, %9, %10 : vector<4x1x8xi32>
    %12 = vector.broadcast %8 : vector<4x8x1xi1> to vector<4x8x8xi1>
    %13 = vector.broadcast %11 : vector<4x1x8xi1> to vector<4x8x8xi1>
    %14 = arith.andi %12, %13 : vector<4x8x8xi1>
    %cst_14 = arith.constant -2.38197633E+38 : f32
    %15 = vector.broadcast %cst_14 : f32 to vector<4x8x8xf32>
    %16 = arith.select %14, %15, %5 : vector<4x8x8xi1>, vector<4x8x8xf32>
    %c0_15 = arith.constant 0 : index
    %c0_16 = arith.constant 0 : index
    %c0_17 = arith.constant 0 : index
    %17 = vector.load %arg9[%c0_15, %c0_16, %c0_17] : memref<4x8x1xf32, #tpu.memory_space<vmem>>, vector<4x8x1xf32>
    %cst_18 = arith.constant dense<0xFF800000> : vector<4x8xf32>
    %18 = vector.multi_reduction <maximumf>, %16, %cst_18 [2] : vector<4x8x8xf32> to vector<4x8xf32>
    %19 = vector.shape_cast %18 : vector<4x8xf32> to vector<4x8x1xf32>
    %20 = arith.maximumf %17, %19 : vector<4x8x1xf32>
    %21 = arith.subf %17, %20 : vector<4x8x1xf32>
    %22 = math.exp %21 : vector<4x8x1xf32>
    %23 = vector.broadcast %20 : vector<4x8x1xf32> to vector<4x8x8xf32>
    %24 = arith.subf %16, %23 : vector<4x8x8xf32>
    %25 = math.exp %24 : vector<4x8x8xf32>
    %c0_19 = arith.constant 0 : index
    %c0_20 = arith.constant 0 : index
    %c0_21 = arith.constant 0 : index
    %26 = vector.load %arg10[%c0_19, %c0_20, %c0_21] : memref<4x8x1xf32, #tpu.memory_space<vmem>>, vector<4x8x1xf32>
    %27 = arith.mulf %22, %26 : vector<4x8x1xf32>
    %cst_22 = arith.constant dense<0.000000e+00> : vector<4x8xf32>
    %28 = vector.multi_reduction <add>, %25, %cst_22 [2] : vector<4x8x8xf32> to vector<4x8xf32>
    %29 = vector.shape_cast %28 : vector<4x8xf32> to vector<4x8x1xf32>
    %30 = arith.addf %27, %29 : vector<4x8x1xf32>
    %c0_23 = arith.constant 0 : index
    %c0_24 = arith.constant 0 : index
    %c0_25 = arith.constant 0 : index
    %31 = vector.load %arg10[%c0_23, %c0_24, %c0_25] : memref<4x8x1xf32, #tpu.memory_space<vmem>>, vector<4x8x1xf32>
    tpu.vector_store %arg10[%c0_23, %c0_24, %c0_25], %30 {strides = array<i32>} : memref<4x8x1xf32, #tpu.memory_space<vmem>>, vector<4x8x1xf32>,
    %c0_26 = arith.constant 0 : index
    %c0_27 = arith.constant 0 : index
    %c0_28 = arith.constant 0 : index
    %32 = vector.load %arg11[%c0_26, %c0_27, %c0_28] : memref<4x8x32xf32, #tpu.memory_space<vmem>>, vector<4x8x32xf32>
    %33 = vector.broadcast %22 : vector<4x8x1xf32> to vector<4x8x32xf32>
    %34 = arith.mulf %33, %32 : vector<4x8x32xf32>
    %c0_29 = arith.constant 0 : index
    %c0_30 = arith.constant 0 : index
    %c0_31 = arith.constant 0 : index
    %35 = vector.load %arg5[%c0_29, %c0_30, %c0_31] : memref<4x8x32xf32, #tpu.memory_space<vmem>>, vector<4x8x32xf32>
    "tpu.trace_start"() <{level = 10 : i32, message = "gqk,gkd->gqd"}> : () -> ()
    %cst_32 = arith.constant dense<0.000000e+00> : vector<4x8x32xf32>
    %36 = tpu.matmul %25, %35, %cst_32 {dimension_numbers = #tpu.dot_dimension_numbers<[2], [1], [1], [2], [0, 0, 0, 1, 1, 2], [0], [0]>} : vector<4x8x8xf32>, vector<4x8x32xf32>, vector<4x8x32xf32> -> vector<4x8x32xf32>
    "tpu.trace_stop"() : () -> ()
    %37 = arith.addf %34, %36 : vector<4x8x32xf32>
    %c0_33 = arith.constant 0 : index
    %c0_34 = arith.constant 0 : index
    %c0_35 = arith.constant 0 : index
    %38 = vector.load %arg11[%c0_33, %c0_34, %c0_35] : memref<4x8x32xf32, #tpu.memory_space<vmem>>, vector<4x8x32xf32>
    tpu.vector_store %arg11[%c0_33, %c0_34, %c0_35], %37 {strides = array<i32>} : memref<4x8x32xf32, #tpu.memory_space<vmem>>, vector<4x8x32xf32>,
    %c0_36 = arith.constant 0 : index
    %c0_37 = arith.constant 0 : index
    %c0_38 = arith.constant 0 : index
    %39 = vector.load %arg9[%c0_36, %c0_37, %c0_38] : memref<4x8x1xf32, #tpu.memory_space<vmem>>, vector<4x8x1xf32>
    tpu.vector_store %arg9[%c0_36, %c0_37, %c0_38], %20 {strides = array<i32>} : memref<4x8x1xf32, #tpu.memory_space<vmem>>, vector<4x8x1xf32>,
    %c0_i32_39 = arith.constant 0 : i32
    %40 = arith.cmpi eq, %arg2, %c0_i32_39 : i32
    %41 = arith.extui %40 : i1 to i32
    %c0_i32_40 = arith.constant 0 : i32
    %42 = arith.cmpi ne, %41, %c0_i32_40 : i32
    scf.if %42 {
      %c0_41 = arith.constant 0 : index
      %c0_42 = arith.constant 0 : index
      %c0_43 = arith.constant 0 : index
      %43 = vector.load %arg10[%c0_41, %c0_42, %c0_43] : memref<4x8x1xf32, #tpu.memory_space<vmem>>, vector<4x8x1xf32>
      %cst_44 = arith.constant 1.000000e+00 : f32
      %44 = vector.broadcast %cst_44 : f32 to vector<4x8x1xf32>
      %45 = arith.divf %44, %43 : vector<4x8x1xf32>
      %c0_45 = arith.constant 0 : index
      %c0_46 = arith.constant 0 : index
      %c0_47 = arith.constant 0 : index
      %46 = vector.load %arg11[%c0_45, %c0_46, %c0_47] : memref<4x8x32xf32, #tpu.memory_space<vmem>>, vector<4x8x32xf32>
      %47 = vector.broadcast %45 : vector<4x8x1xf32> to vector<4x8x32xf32>
      %48 = arith.mulf %46, %47 : vector<4x8x32xf32>
      %c0_48 = arith.constant 0 : index
      %c0_49 = arith.constant 0 : index
      %c0_50 = arith.constant 0 : index
      %49 = vector.load %arg8[%c0_48, %c0_49, %c0_50] : memref<4x8x32xf32, #tpu.memory_space<vmem>>, vector<4x8x32xf32>
      tpu.vector_store %arg8[%c0_48, %c0_49, %c0_50], %48 {strides = array<i32>} : memref<4x8x32xf32, #tpu.memory_space<vmem>>, vector<4x8x32xf32>,
    } else {
    }
    return
  }
  func.func @transform_0(%arg0: i32, %arg1: i32, %arg2: i32) -> (i32, i32, i32) {
    %c0_i32 = arith.constant 0 : i32
    %c0_i32_0 = arith.constant 0 : i32
    return %arg0, %arg1, %c0_i32 : i32, i32, i32
  }
  func.func @transform_1(%arg0: i32, %arg1: i32, %arg2: i32) -> (i32, i32, i32) {
    %c0_i32 = arith.constant 0 : i32
    %c0_i32_0 = arith.constant 0 : i32
    return %arg0, %arg2, %c0_i32 : i32, i32, i32
  }
  func.func @transform_2(%arg0: i32, %arg1: i32, %arg2: i32) -> (i32, i32, i32) {
    %c0_i32 = arith.constant 0 : i32
    %c0_i32_0 = arith.constant 0 : i32
    return %arg0, %arg2, %c0_i32 : i32, i32, i32
  }
  func.func @transform_3(%arg0: i32, %arg1: i32, %arg2: i32) -> (i32, i32, i32) {
    %c0_i32 = arith.constant 0 : i32
    %c0_i32_0 = arith.constant 0 : i32
    return %arg0, %arg1, %c0_i32 : i32, i32, i32
  }
  func.func @transform_4(%arg0: i32, %arg1: i32, %arg2: i32) -> (i32, i32, i32) {
    %c0_i32 = arith.constant 0 : i32
    %c0_i32_0 = arith.constant 0 : i32
    return %arg0, %c0_i32, %arg2 : i32, i32, i32
  }
  func.func @transform_5(%arg0: i32, %arg1: i32, %arg2: i32) -> (i32, i32, i32) {
    %c0_i32 = arith.constant 0 : i32
    %c0_i32_0 = arith.constant 0 : i32
    return %arg0, %arg1, %c0_i32 : i32, i32, i32
  }
}

</mosaic_0001>

<llo_original>
// kernel: tpu_custom_call.1
$region0: #{tpu_custom_call.1}
  #allocation0 [shape = 'u32[]', space=smem, size = 0x4, offset = 0x4, fixed_abs, tag = 'smem constant byte address 0x4 - core index']
  #allocation1 [shape = 'u32[144,128]{1,0:T(1,128)}', space=vmem, size = 0x12000, scoped, tag = 'internal scratch']
  #allocation2 [shape = 'f32[4,8,1]{2,1,0:T(8,128)}', space=vmem, size = 0x4000, scoped, tag = 'scratch operand']
  #allocation3 [shape = 'f32[4,8,1]{2,1,0:T(8,128)}', space=vmem, size = 0x4000, scoped, tag = 'scratch operand']
  #allocation4 [shape = 'f32[4,8,32]{2,1,0:T(8,128)}', space=vmem, size = 0x4000, scoped, tag = 'scratch operand']
  #allocation5 [shape = 'f32[4,8,32]{2,1,0:T(8,128)}', space=vmem, size = 0x4000, scoped, tag = 'scratch operand']
  %s0 = inlined_call_operand.vmem [shape: f32[8,8,32], index: 0, kind: input, shape index: {}]
  %s1 = inlined_call_operand.hbm [shape: f32[8,8,32], index: 1, kind: input, shape index: {}]
  %s2 = inlined_call_operand.hbm [shape: f32[8,8,32], index: 2, kind: input, shape index: {}]
  %s3 = inlined_call_operand.vmem [shape: s32[8,8,1], index: 3, kind: input, shape index: {}]
  %s4 = inlined_call_operand.vmem [shape: s32[8,1,8], index: 4, kind: input, shape index: {}]
  %s5 = inlined_call_operand.hbm [shape: f32[8,8,32], index: 5, kind: output, shape index: {}]
  %s6 = sld [smem:[#allocation0]]
  $region69: #{tpu_custom_call.1} parent=0
    _
  %s8 = ssub.s32 1, %s6
  %s9 = scalar_select 0, %s8, %s6
  $region1: #{tpu_custom_call.1} parent=0
    #allocation6 [shape = 'u8[32768]{0}', space=vmem, size = 0x8000, scoped, tag = 'input window, operand 1']
    #allocation7 [shape = 's32[2]{0}', space=sflag, size = 0x8, scoped, tag = 'scoped memory for tpu_custom_call.1']
    #allocation8 [shape = 's32[2]{0}', space=sflag, size = 0x8, scoped, tag = 'scoped memory for tpu_custom_call.1']
    #allocation9 [shape = 'u8[32768]{0}', space=vmem, size = 0x8000, scoped, tag = 'input window, operand 2']
    #allocation10 [shape = 's32[2]{0}', space=sflag, size = 0x8, scoped, tag = 'scoped memory for tpu_custom_call.1']
    #allocation11 [shape = 'u8[32768]{0}', space=vmem, size = 0x8000, scoped, tag = 'output window, operand 0']
    %10 = vsyncpa [#allocation7], 0
    %s11 = scalar_lea.sflag [#allocation7], 1
    %12 = vsyncpa %s11, 0
    %13 = vsyncpa [#allocation10], 0
    %s14 = scalar_lea.sflag [#allocation10], 1
    %15 = vsyncpa %s14, 0
    %16 = vsyncpa [#allocation8], 0
    %s17 = scalar_lea.sflag [#allocation8], 1
    %18 = vsyncpa %s17, 0
    loop: start=0, step=1, limit=4
    $region2: #{tpu_custom_call.1} parent=1 // loop_pre_header
      _
    $region3: #{tpu_custom_call.1} parent=1 // loop_header
      %s20 = sphi 0, %s24
      %p21 = scmp.ge.s32.totalorder %s20, 4
      %s27 = sphi 0, %s46
      %s28 = sphi 0, %s42
      %s29 = sphi 0, %s38
      %s30 = sphi 0, %s27
      %s31 = sphi 0, %s28
      %s32 = sphi 0, %s29
      %s33 = sphi 0, %s30
      %s34 = sphi 0, %s31
      %s35 = sphi 0, %s32
      %s51 = sphi 0, %s53
      %s54 = sphi 0, %s51
      %s55 = sphi 0, %s54
      %s71 = sphi 0, %s55
      %s79 = sphi 0, %s81
      %s82 = sphi 0, %s79
      %s83 = sphi 0, %s82
      %s99 = sphi 0, %s83
      %s107 = sphi 0, %s109
      %s110 = sphi 0, %s107
      %s111 = sphi 0, %s110
      %s127 = sphi 0, %s111
      %s135 = sphi 0, %s137
      %s138 = sphi 0, %s135
      %s139 = sphi 0, %s138
      %s155 = sphi 0, %s139
      %s163 = sphi 0, %s165
      %s166 = sphi 0, %s163
      %s167 = sphi 0, %s166
      %s183 = sphi 0, %s167
      %s191 = sphi 0, %s193
      %s194 = sphi 0, %s191
      %s195 = sphi 0, %s194
      %s211 = sphi 0, %s195
    $region4: #{tpu_custom_call.1} parent=1 // loop_header_branch
      %23 = sbr.rel (%p21) target = $region8
    $region5: #{tpu_custom_call.1} parent=1 // loop_body
      %s25 = ssub.s32 %s20, 1
      %s26 = ssub.s32 %s20, 2
      %s36 = sadd.s32 1, %s29
      %p37 = scmp.ge.s32.totalorder %s36, 1
      %s38 = scalar_select %p37, 0, %s36
      %s39 = sadd.s32 1, %s28
      %s40 = scalar_select %p37, %s39, %s28
      %p41 = scmp.ge.s32.totalorder %s40, 1
      %s42 = scalar_select %p41, 0, %s40
      %s43 = sadd.s32 1, %s27
      %s44 = scalar_select %p41, %s43, %s27
      %p45 = scmp.ge.s32.totalorder %s44, 2
      %s46 = scalar_select %p45, 0, %s44
      %s47 = ssub.s32 %s27, %s46
      %s48 = ssub.s32 %s28, %s42
      %s49 = sor.u32 %s47, %s48
      %p50 = scmp.eq.s32.totalorder %s49, 0
      %s52 = sadd.s32 %s51, 1
      %s53 = scalar_select %p50, %s51, %s52
      %p56 = pneg %p50
      %p57 = scmp.eq.s32.totalorder %s20, 1
      %p58 = por %p56, %p57
      %p59 = scmp.ne.s32.totalorder %s51, %s54
      %p60 = scmp.eq.s32.totalorder %s20, 0
      %p61 = por %p59, %p60
      %p62 = scmp.ne.s32.totalorder %s51, %s54
      %p63 = scmp.eq.s32.totalorder %s25, 1
      %p64 = por %p62, %p63
      %p65 = scmp.ne.s32.totalorder %s54, %s55
      %p66 = scmp.eq.s32.totalorder %s25, 0
      %p67 = por %p65, %p66
      %p68 = scmp.ne.s32.totalorder %s54, %s55
      %p69 = scmp.eq.s32.totalorder %s26, 1
      %p70 = por %p68, %p69
      %p72 = scmp.ne.s32.totalorder %s55, %s71
      %p73 = scmp.eq.s32.totalorder %s26, 0
      %p74 = por %p72, %p73
      %s75 = ssub.s32 %s27, %s46
      %s76 = ssub.s32 %s29, %s38
      %s77 = sor.u32 %s75, %s76
      %p78 = scmp.eq.s32.totalorder %s77, 0
      %s80 = sadd.s32 %s79, 1
      %s81 = scalar_select %p78, %s79, %s80
      %p84 = pneg %p78
      %p85 = scmp.eq.s32.totalorder %s20, 1
      %p86 = por %p84, %p85
      %p87 = scmp.ne.s32.totalorder %s79, %s82
      %p88 = scmp.eq.s32.totalorder %s20, 0
      %p89 = por %p87, %p88
      %p90 = scmp.ne.s32.totalorder %s79, %s82
      %p91 = scmp.eq.s32.totalorder %s25, 1
      %p92 = por %p90, %p91
      %p93 = scmp.ne.s32.totalorder %s82, %s83
      %p94 = scmp.eq.s32.totalorder %s25, 0
      %p95 = por %p93, %p94
      %p96 = scmp.ne.s32.totalorder %s82, %s83
      %p97 = scmp.eq.s32.totalorder %s26, 1
      %p98 = por %p96, %p97
      %p100 = scmp.ne.s32.totalorder %s83, %s99
      %p101 = scmp.eq.s32.totalorder %s26, 0
      %p102 = por %p100, %p101
      %s103 = ssub.s32 %s27, %s46
      %s104 = ssub.s32 %s29, %s38
      %s105 = sor.u32 %s103, %s104
      %p106 = scmp.eq.s32.totalorder %s105, 0
      %s108 = sadd.s32 %s107, 1
      %s109 = scalar_select %p106, %s107, %s108
      %p112 = pneg %p106
      %p113 = scmp.eq.s32.totalorder %s20, 1
      %p114 = por %p112, %p113
      %p115 = scmp.ne.s32.totalorder %s107, %s110
      %p116 = scmp.eq.s32.totalorder %s20, 0
      %p117 = por %p115, %p116
      %p118 = scmp.ne.s32.totalorder %s107, %s110
      %p119 = scmp.eq.s32.totalorder %s25, 1
      %p120 = por %p118, %p119
      %p121 = scmp.ne.s32.totalorder %s110, %s111
      %p122 = scmp.eq.s32.totalorder %s25, 0
      %p123 = por %p121, %p122
      %p124 = scmp.ne.s32.totalorder %s110, %s111
      %p125 = scmp.eq.s32.totalorder %s26, 1
      %p126 = por %p124, %p125
      %p128 = scmp.ne.s32.totalorder %s111, %s127
      %p129 = scmp.eq.s32.totalorder %s26, 0
      %p130 = por %p128, %p129
      %s131 = ssub.s32 %s27, %s46
      %s132 = ssub.s32 %s28, %s42
      %s133 = sor.u32 %s131, %s132
      %p134 = scmp.eq.s32.totalorder %s133, 0
      %s136 = sadd.s32 %s135, 1
      %s137 = scalar_select %p134, %s135, %s136
      %p140 = pneg %p134
      %p141 = scmp.eq.s32.totalorder %s20, 1
      %p142 = por %p140, %p141
      %p143 = scmp.ne.s32.totalorder %s135, %s138
      %p144 = scmp.eq.s32.totalorder %s20, 0
      %p145 = por %p143, %p144
      %p146 = scmp.ne.s32.totalorder %s135, %s138
      %p147 = scmp.eq.s32.totalorder %s25, 1
      %p148 = por %p146, %p147
      %p149 = scmp.ne.s32.totalorder %s138, %s139
      %p150 = scmp.eq.s32.totalorder %s25, 0
      %p151 = por %p149, %p150
      %p152 = scmp.ne.s32.totalorder %s138, %s139
      %p153 = scmp.eq.s32.totalorder %s26, 1
      %p154 = por %p152, %p153
      %p156 = scmp.ne.s32.totalorder %s139, %s155
      %p157 = scmp.eq.s32.totalorder %s26, 0
      %p158 = por %p156, %p157
      %s159 = ssub.s32 %s27, %s46
      %s160 = ssub.s32 %s29, %s38
      %s161 = sor.u32 %s159, %s160
      %p162 = scmp.eq.s32.totalorder %s161, 0
      %s164 = sadd.s32 %s163, 1
      %s165 = scalar_select %p162, %s163, %s164
      %p168 = pneg %p162
      %p169 = scmp.eq.s32.totalorder %s20, 1
      %p170 = por %p168, %p169
      %p171 = scmp.ne.s32.totalorder %s163, %s166
      %p172 = scmp.eq.s32.totalorder %s20, 0
      %p173 = por %p171, %p172
      %p174 = scmp.ne.s32.totalorder %s163, %s166
      %p175 = scmp.eq.s32.totalorder %s25, 1
      %p176 = por %p174, %p175
      %p177 = scmp.ne.s32.totalorder %s166, %s167
      %p178 = scmp.eq.s32.totalorder %s25, 0
      %p179 = por %p177, %p178
      %p180 = scmp.ne.s32.totalorder %s166, %s167
      %p181 = scmp.eq.s32.totalorder %s26, 1
      %p182 = por %p180, %p181
      %p184 = scmp.ne.s32.totalorder %s167, %s183
      %p185 = scmp.eq.s32.totalorder %s26, 0
      %p186 = por %p184, %p185
      %s187 = ssub.s32 %s27, %s46
      %s188 = ssub.s32 %s28, %s42
      %s189 = sor.u32 %s187, %s188
      %p190 = scmp.eq.s32.totalorder %s189, 0
      %s192 = sadd.s32 %s191, 1
      %s193 = scalar_select %p190, %s191, %s192
      %p196 = pneg %p190
      %p197 = scmp.eq.s32.totalorder %s20, 1
      %p198 = por %p196, %p197
      %p199 = scmp.ne.s32.totalorder %s191, %s194
      %p200 = scmp.eq.s32.totalorder %s20, 0
      %p201 = por %p199, %p200
      %p202 = scmp.ne.s32.totalorder %s191, %s194
      %p203 = scmp.eq.s32.totalorder %s25, 1
      %p204 = por %p202, %p203
      %p205 = scmp.ne.s32.totalorder %s194, %s195
      %p206 = scmp.eq.s32.totalorder %s25, 0
      %p207 = por %p205, %p206
      %p208 = scmp.ne.s32.totalorder %s194, %s195
      %p209 = scmp.eq.s32.totalorder %s26, 1
      %p210 = por %p208, %p209
      %p212 = scmp.ne.s32.totalorder %s195, %s211
      %p213 = scmp.eq.s32.totalorder %s26, 0
      %p214 = por %p212, %p213
      %p215 = scmp.le.s32.totalorder 1, %s20
      %p216 = scmp.lt.s32.totalorder %s20, 3
      %p217 = pnand %p215, %p216
      %p218 = pneg %p217
      // Predicated region
      $region9: #{tpu_custom_call.1} parent=5 // pred_check
        _
      $region10: #{tpu_custom_call.1} parent=5 // pred_check_branch
        %220 = sbr.rel (%p217) target = $region12
      $region11: #{tpu_custom_call.1} parent=5 // pred_region
        %s221 = ssub.s32 %s20, 1
      $region12: #{tpu_custom_call.1} parent=5 // pred_fallthru
        _
      %p222 = scmp.lt.s32.totalorder %s20, 2
      // Predicated region
      $region13: #{tpu_custom_call.1} parent=5 // pred_check
        %p223 = pneg %p222
      $region14: #{tpu_custom_call.1} parent=5 // pred_check_branch
        %225 = sbr.rel (%p223) target = $region16
      $region15: #{tpu_custom_call.1} parent=5 // pred_region
        // Predicated region
        $region17: #{tpu_custom_call.1} parent=15 // pred_check
          %p226 = pneg %p61
        $region18: #{tpu_custom_call.1} parent=15 // pred_check_branch
          %228 = sbr.rel (%p226) target = $region20
        $region19: #{tpu_custom_call.1} parent=15 // pred_region
          %s229 = smul.u32 4, %s27
          %p230 = scmp.lt.s32.totalorder %s229, 7
          %s231 = scalar_select %p230, %s229, 7
          %p232 = scmp.lt.s32.totalorder %s28, 0
          %s233 = scalar_select %p232, %s28, 0
          %s234 = sadd.s32 %s233, %s231
          %s235 = smul.addr %s234, 8
          %s236 = scalar_lea.vmem %s0, %s235
          %s237 = smul.u32 4, %s27
        $region20: #{tpu_custom_call.1} parent=15 // pred_fallthru
          _
        // Predicated region
        $region21: #{tpu_custom_call.1} parent=15 // pred_check
          %p238 = pneg %p89
        $region22: #{tpu_custom_call.1} parent=15 // pred_check_branch
          %240 = sbr.rel (%p238) target = $region24
        $region23: #{tpu_custom_call.1} parent=15 // pred_region
          %s241 = sand.u32 %s79, 1
          %s242 = scalar_lea.sflag [#allocation7], %s241
          %s243 = sand.u32 %s79, 1
          %s244 = smul.addr %s243, 32
          %s245 = scalar_lea.vmem [#allocation6], %s244
          %s246 = smul.u32 4, %s27
          %s248 = ssub.s32 512, 512
          %249 = vsyncadd %s242, %s248
          %s250 = sadd.s32 %s29, %s246
          %s251 = smul.addr %s250, 128
          %s252 = scalar_lea.hbm %s1, %s251
          %s253 = sshll.u32 %s245, 4
          %s254 = int_to_ptr.vmem [resolvable:$true] %s253
          %259 = dma.hbm_to_vmem [thread:$0]  %s252, 512, %s254, %s242, 128, 128, 8
        $region24: #{tpu_custom_call.1} parent=15 // pred_fallthru
          _
        // Predicated region
        $region25: #{tpu_custom_call.1} parent=15 // pred_check
          %p260 = pneg %p117
        $region26: #{tpu_custom_call.1} parent=15 // pred_check_branch
          %262 = sbr.rel (%p260) target = $region28
        $region27: #{tpu_custom_call.1} parent=15 // pred_region
          %s263 = sand.u32 %s107, 1
          %s264 = scalar_lea.sflag [#allocation10], %s263
          %s265 = sand.u32 %s107, 1
          %s266 = smul.addr %s265, 32
          %s267 = scalar_lea.vmem [#allocation9], %s266
          %s268 = smul.u32 4, %s27
          %s270 = ssub.s32 512, 512
          %271 = vsyncadd %s264, %s270
          %s272 = sadd.s32 %s29, %s268
          %s273 = smul.addr %s272, 128
          %s274 = scalar_lea.hbm %s2, %s273
          %s275 = sshll.u32 %s267, 4
          %s276 = int_to_ptr.vmem [resolvable:$true] %s275
          %281 = dma.hbm_to_vmem [thread:$0]  %s274, 512, %s276, %s264, 128, 128, 8
        $region28: #{tpu_custom_call.1} parent=15 // pred_fallthru
          _
        // Predicated region
        $region29: #{tpu_custom_call.1} parent=15 // pred_check
          %p282 = pneg %p145
        $region30: #{tpu_custom_call.1} parent=15 // pred_check_branch
          %284 = sbr.rel (%p282) target = $region32
        $region31: #{tpu_custom_call.1} parent=15 // pred_region
          %s285 = smul.u32 4, %s27
          %p286 = scmp.lt.s32.totalorder %s285, 7
          %s287 = scalar_select %p286, %s285, 7
          %p288 = scmp.lt.s32.totalorder %s28, 0
          %s289 = scalar_select %p288, %s28, 0
          %s290 = sadd.s32 %s289, %s287
          %s291 = smul.addr %s290, 8
          %s292 = scalar_lea.vmem %s3, %s291
          %s293 = smul.u32 4, %s27
        $region32: #{tpu_custom_call.1} parent=15 // pred_fallthru
          _
        // Predicated region
        $region33: #{tpu_custom_call.1} parent=15 // pred_check
          %p294 = pneg %p173
        $region34: #{tpu_custom_call.1} parent=15 // pred_check_branch
          %296 = sbr.rel (%p294) target = $region36
        $region35: #{tpu_custom_call.1} parent=15 // pred_region
          %s297 = smul.u32 4, %s27
          %p298 = scmp.lt.s32.totalorder %s297, 7
          %s299 = scalar_select %p298, %s297, 7
          %p300 = scmp.lt.s32.totalorder %s29, 0
          %s301 = scalar_select %p300, %s29, 0
          %s302 = sadd.s32 %s301, %s299
          %s303 = scalar_lea.vmem %s4, %s302
          %s304 = smul.u32 4, %s27
        $region36: #{tpu_custom_call.1} parent=15 // pred_fallthru
          _
      $region16: #{tpu_custom_call.1} parent=5 // pred_fallthru
        _
      %p305 = scmp.le.s32.totalorder 1, %s20
      %p306 = scmp.lt.s32.totalorder %s20, 3
      %p307 = pnand %p305, %p306
      %p308 = pneg %p307
      // Predicated region
      $region37: #{tpu_custom_call.1} parent=5 // pred_check
        _
      $region38: #{tpu_custom_call.1} parent=5 // pred_check_branch
        %310 = sbr.rel (%p307) target = $region40
      $region39: #{tpu_custom_call.1} parent=5 // pred_region
        %s311 = ssub.s32 %s20, 1
        %s312 = sand.u32 %s82, 1
        %s313 = scalar_lea.sflag [#allocation7], %s312
        %s314 = sand.u32 %s82, 1
        %s315 = smul.addr %s314, 32
        %s316 = scalar_lea.vmem [#allocation6], %s315
        // Predicated region
        $region41: #{tpu_custom_call.1} parent=39 // pred_check
          %p317 = pneg %p95
        $region42: #{tpu_custom_call.1} parent=39 // pred_check_branch
          %319 = sbr.rel (%p317) target = $region44
        $region43: #{tpu_custom_call.1} parent=39 // pred_region
          %320 = dma.done %s313, 512
        $region44: #{tpu_custom_call.1} parent=39 // pred_fallthru
          _
        %s321 = sand.u32 %s110, 1
        %s322 = scalar_lea.sflag [#allocation10], %s321
        %s323 = sand.u32 %s110, 1
        %s324 = smul.addr %s323, 32
        %s325 = scalar_lea.vmem [#allocation9], %s324
        // Predicated region
        $region45: #{tpu_custom_call.1} parent=39 // pred_check
          %p326 = pneg %p123
        $region46: #{tpu_custom_call.1} parent=39 // pred_check_branch
          %328 = sbr.rel (%p326) target = $region48
        $region47: #{tpu_custom_call.1} parent=39 // pred_region
          %329 = dma.done %s322, 512
        $region48: #{tpu_custom_call.1} parent=39 // pred_fallthru
          _
        %s330 = smul.u32 4, %s30
        %p331 = scmp.lt.s32.totalorder %s330, 7
        %s332 = scalar_select %p331, %s330, 7
        %p333 = scmp.lt.s32.totalorder %s31, 0
        %s334 = scalar_select %p333, %s31, 0
        %s335 = sadd.s32 %s334, %s332
        %s336 = smul.addr %s335, 8
        %s337 = scalar_lea.vmem %s0, %s336
        %p338 = pneg %p67
        %p339 = pneg %p64
        %s340 = sand.u32 %s82, 1
        %s341 = scalar_lea.sflag [#allocation7], %s340
        %s342 = sand.u32 %s82, 1
        %s343 = smul.addr %s342, 32
        %s344 = scalar_lea.vmem [#allocation6], %s343
        %p345 = pneg %p95
        %p346 = pneg %p92
        %s347 = sand.u32 %s110, 1
        %s348 = scalar_lea.sflag [#allocation10], %s347
        %s349 = sand.u32 %s110, 1
        %s350 = smul.addr %s349, 32
        %s351 = scalar_lea.vmem [#allocation9], %s350
        %p352 = pneg %p123
        %p353 = pneg %p120
        %s354 = smul.u32 4, %s30
        %p355 = scmp.lt.s32.totalorder %s354, 7
        %s356 = scalar_select %p355, %s354, 7
        %p357 = scmp.lt.s32.totalorder %s31, 0
        %s358 = scalar_select %p357, %s31, 0
        %s359 = sadd.s32 %s358, %s356
        %s360 = smul.addr %s359, 8
        %s361 = scalar_lea.vmem %s3, %s360
        %p362 = pneg %p151
        %p363 = pneg %p148
        %s364 = smul.u32 4, %s30
        %p365 = scmp.lt.s32.totalorder %s364, 7
        %s366 = scalar_select %p365, %s364, 7
        %p367 = scmp.lt.s32.totalorder %s32, 0
        %s368 = scalar_select %p367, %s32, 0
        %s369 = sadd.s32 %s368, %s366
        %s370 = scalar_lea.vmem %s4, %s369
        %p371 = pneg %p179
        %p372 = pneg %p176
        %p373 = pneg %p207
        %p374 = pneg %p204
        %s375 = sand.u32 %s194, 1
        %s376 = scalar_lea.sflag [#allocation8], %s375
        %s377 = sand.u32 %s194, 1
        %s378 = smul.addr %s377, 32
        %s379 = scalar_lea.vmem [#allocation11], %s378
        %s380 = smul.u32 4, %s30
        %p381 = scmp.lt.s32.totalorder %s380, 7
        %s382 = scalar_select %p381, %s380, 7
        %p383 = scmp.lt.s32.totalorder %s31, 0
        %s384 = scalar_select %p383, %s31, 0
        %s385 = sadd.s32 %s384, %s382
        %s386 = smul.addr %s385, 8
        %s387 = scalar_lea.vmem %s0, %s386
        %s388 = smul.u32 4, %s30
        %s389 = smul.u32 4, %s30
        %s390 = smul.u32 4, %s30
        %s391 = smul.u32 4, %s30
        %p392 = scmp.lt.s32.totalorder %s391, 7
        %s393 = scalar_select %p392, %s391, 7
        %p394 = scmp.lt.s32.totalorder %s31, 0
        %s395 = scalar_select %p394, %s31, 0
        %s396 = sadd.s32 %s395, %s393
        %s397 = smul.addr %s396, 8
        %s398 = scalar_lea.vmem %s3, %s397
        %s399 = smul.u32 4, %s30
        %s400 = smul.u32 4, %s30
        %p401 = scmp.lt.s32.totalorder %s400, 7
        %s402 = scalar_select %p401, %s400, 7
        %p403 = scmp.lt.s32.totalorder %s32, 0
        %s404 = scalar_select %p403, %s32, 0
        %s405 = sadd.s32 %s404, %s402
        %s406 = scalar_lea.vmem %s4, %s405
        %s407 = smul.u32 4, %s30
        %s408 = smul.u32 4, %s30
        %p409 = scmp.eq.s32.totalorder %s32, 0
        // Predicated region
        $region49: #{tpu_custom_call.1} parent=39 // pred_check
          %p410 = pneg %p409
        $region50: #{tpu_custom_call.1} parent=39 // pred_check_branch
          %412 = sbr.rel (%p410) target = $region52
        $region51: #{tpu_custom_call.1} parent=39 // pred_region
          %vm413 = vcmask 7168
          %414 = vst.msk [vmem:[#allocation2] sm:$0xff] %vm413, -inf
          %415 = vst.msk [vmem:[#allocation2 + $0x8] sm:$0xff] %vm413, -inf
          %416 = vst.msk [vmem:[#allocation2 + $0x10] sm:$0xff] %vm413, -inf
          %417 = vst.msk [vmem:[#allocation2 + $0x18] sm:$0xff] %vm413, -inf
          %418 = vst.msk [vmem:[#allocation3] sm:$0xff] %vm413, 0.0
          %419 = vst.msk [vmem:[#allocation3 + $0x8] sm:$0xff] %vm413, 0.0
          %420 = vst.msk [vmem:[#allocation3 + $0x10] sm:$0xff] %vm413, 0.0
          %421 = vst.msk [vmem:[#allocation3 + $0x18] sm:$0xff] %vm413, 0.0
          %vm422 = vcmask 261120
          %423 = vst.msk [vmem:[#allocation4] sm:$0xff] %vm422, 0.0
          %424 = vst.msk [vmem:[#allocation4 + $0x8] sm:$0xff] %vm422, 0.0
          %425 = vst.msk [vmem:[#allocation4 + $0x10] sm:$0xff] %vm422, 0.0
          %426 = vst.msk [vmem:[#allocation4 + $0x18] sm:$0xff] %vm422, 0.0
          %v427 = vld [vmem:[%s387] sm:$0xff]
          %v428 = vld [vmem:[%s387 + $0x8] sm:$0xff]
          %v429 = vld [vmem:[%s387 + $0x10] sm:$0xff]
          %v430 = vld [vmem:[%s387 + $0x18] sm:$0xff]
          %v431 = vmul.f32 %v427, 0.17677669
          %v432 = vmul.f32 %v428, 0.17677669
          %v433 = vmul.f32 %v429, 0.17677669
          %v434 = vmul.f32 %v430, 0.17677669
          %435 = vst.msk [vmem:[#allocation5] sm:$0xff] %vm422, %v431
          %436 = vst.msk [vmem:[#allocation5 + $0x8] sm:$0xff] %vm422, %v432
          %437 = vst.msk [vmem:[#allocation5 + $0x10] sm:$0xff] %vm422, %v433
          %438 = vst.msk [vmem:[#allocation5 + $0x18] sm:$0xff] %vm422, %v434
        $region52: #{tpu_custom_call.1} parent=39 // pred_fallthru
          _
        %v439 = vld [vmem:[#allocation5] sm:$0xff]
        %v440 = vld [vmem:[#allocation5 + $0x8] sm:$0xff]
        %v441 = vld [vmem:[#allocation5 + $0x10] sm:$0xff]
        %v442 = vld [vmem:[#allocation5 + $0x18] sm:$0xff]
        %v443 = vld [vmem:[%s316] sm:$0xff]
        %v444 = vld [vmem:[%s316 + $0x8] sm:$0xff]
        %v445 = vld [vmem:[%s316 + $0x10] sm:$0xff]
        %v446 = vld [vmem:[%s316 + $0x18] sm:$0xff]
        %vm447 = vcmask 261120
        %v449 = vsel %vm447, %v439, 0
        %v452 = vsel %vm447, %v443, 0
        %454 = vmatprep.subr.mxu0 0.0
        %455 = vmatpush1.xpose.msra.mxu0 %v452
        %456 = vmatprep.subr.mxu0 0.0
        %457 = vmatpush1.xpose.msra.mxu0 0.0
        %458 = vmatprep.subr.mxu0 0.0
        %459 = vmatpush1.xpose.msra.mxu0 0.0
        %460 = vmatprep.subr.mxu0 0.0
        %461 = vmatpush1.xpose.msra.mxu0 0.0
        %462 = vmatprep.subr.mxu0 0.0
        %463 = vmatpush1.xpose.msra.mxu0 0.0
        %464 = vmatprep.subr.mxu0 0.0
        %465 = vmatpush1.xpose.msra.mxu0 0.0
        %466 = vmatprep.subr.mxu0 0.0
        %467 = vmatpush1.xpose.msra.mxu0 0.0
        %468 = vmatprep.subr.mxu0 0.0
        %469 = vmatpush1.xpose.msra.mxu0 0.0
        %470 = vmatprep.subr.mxu0 0.0
        %471 = vmatpush1.xpose.msra.mxu0 0.0
        %472 = vmatprep.subr.mxu0 0.0
        %473 = vmatpush1.xpose.msra.mxu0 0.0
        %474 = vmatprep.subr.mxu0 0.0
        %475 = vmatpush1.xpose.msra.mxu0 0.0
        %476 = vmatprep.subr.mxu0 0.0
        %477 = vmatpush1.xpose.msra.mxu0 0.0
        %478 = vmatprep.subr.mxu0 0.0
        %479 = vmatpush1.xpose.msra.mxu0 0.0
        %480 = vmatprep.subr.mxu0 0.0
        %481 = vmatpush1.xpose.msra.mxu0 0.0
        %482 = vmatprep.subr.mxu0 0.0
        %483 = vmatpush1.xpose.msra.mxu0 0.0
        %484 = vmatprep.subr.mxu0 0.0
        %485 = vmatpush1.xpose.msra.mxu0 0.0
        %486 = vmatprep.subr.mxu0 0.0
        %487 = vmatpush1.xpose.msra.mxu0 0.0
        %488 = vmatprep.subr.mxu0 0.0
        %489 = vmatpush1.xpose.msra.mxu0 0.0
        %490 = vmatprep.subr.mxu0 0.0
        %491 = vmatpush1.xpose.msra.mxu0 0.0
        %492 = vmatprep.subr.mxu0 0.0
        %493 = vmatpush1.xpose.msra.mxu0 0.0
        %494 = vmatprep.subr.mxu0 0.0
        %495 = vmatpush1.xpose.msra.mxu0 0.0
        %496 = vmatprep.subr.mxu0 0.0
        %497 = vmatpush1.xpose.msra.mxu0 0.0
        %498 = vmatprep.subr.mxu0 0.0
        %499 = vmatpush1.xpose.msra.mxu0 0.0
        %500 = vmatprep.subr.mxu0 0.0
        %501 = vmatpush1.xpose.msra.mxu0 0.0
        %502 = vmatprep.subr.mxu0 0.0
        %503 = vmatpush1.xpose.msra.mxu0 0.0
        %504 = vmatprep.subr.mxu0 0.0
        %505 = vmatpush1.xpose.msra.mxu0 0.0
        %506 = vmatprep.subr.mxu0 0.0
        %507 = vmatpush1.xpose.msra.mxu0 0.0
        %508 = vmatprep.subr.mxu0 0.0
        %509 = vmatpush1.xpose.msra.mxu0 0.0
        %510 = vmatprep.subr.mxu0 0.0
        %511 = vmatpush1.xpose.msra.mxu0 0.0
        %512 = vmatprep.subr.mxu0 0.0
        %513 = vmatpush1.xpose.msra.mxu0 0.0
        %514 = vmatprep.subr.mxu0 0.0
        %515 = vmatpush1.xpose.msra.mxu0 0.0
        %516 = vmatprep.subr.mxu0 0.0
        %517 = vmatpush1.xpose.msra.mxu0 0.0
        %518 = vmatprep.mubr.f32.mxu0 0.0
        %519 = vmatmul.mubr.f32.gmra.mrb[0].mxu0 %v449
        %v520 = vpop.f32.mrb[0].mxu0
        %v521 = vadd.f32 0.0, %v520
        %v522 = vpop.f32.mrb[0].mxu0
        %523 = vdwg.mxu0
        %v525 = vsel %vm447, %v440, 0
        %v528 = vsel %vm447, %v444, 0
        %530 = vmatprep.subr.mxu0 0.0
        %531 = vmatpush1.xpose.msra.mxu0 %v528
        %532 = vmatprep.subr.mxu0 0.0
        %533 = vmatpush1.xpose.msra.mxu0 0.0
        %534 = vmatprep.subr.mxu0 0.0
        %535 = vmatpush1.xpose.msra.mxu0 0.0
        %536 = vmatprep.subr.mxu0 0.0
        %537 = vmatpush1.xpose.msra.mxu0 0.0
        %538 = vmatprep.subr.mxu0 0.0
        %539 = vmatpush1.xpose.msra.mxu0 0.0
        %540 = vmatprep.subr.mxu0 0.0
        %541 = vmatpush1.xpose.msra.mxu0 0.0
        %542 = vmatprep.subr.mxu0 0.0
        %543 = vmatpush1.xpose.msra.mxu0 0.0
        %544 = vmatprep.subr.mxu0 0.0
        %545 = vmatpush1.xpose.msra.mxu0 0.0
        %546 = vmatprep.subr.mxu0 0.0
        %547 = vmatpush1.xpose.msra.mxu0 0.0
        %548 = vmatprep.subr.mxu0 0.0
        %549 = vmatpush1.xpose.msra.mxu0 0.0
        %550 = vmatprep.subr.mxu0 0.0
        %551 = vmatpush1.xpose.msra.mxu0 0.0
        %552 = vmatprep.subr.mxu0 0.0
        %553 = vmatpush1.xpose.msra.mxu0 0.0
        %554 = vmatprep.subr.mxu0 0.0
        %555 = vmatpush1.xpose.msra.mxu0 0.0
        %556 = vmatprep.subr.mxu0 0.0
        %557 = vmatpush1.xpose.msra.mxu0 0.0
        %558 = vmatprep.subr.mxu0 0.0
        %559 = vmatpush1.xpose.msra.mxu0 0.0
        %560 = vmatprep.subr.mxu0 0.0
        %561 = vmatpush1.xpose.msra.mxu0 0.0
        %562 = vmatprep.subr.mxu0 0.0
        %563 = vmatpush1.xpose.msra.mxu0 0.0
        %564 = vmatprep.subr.mxu0 0.0
        %565 = vmatpush1.xpose.msra.mxu0 0.0
        %566 = vmatprep.subr.mxu0 0.0
        %567 = vmatpush1.xpose.msra.mxu0 0.0
        %568 = vmatprep.subr.mxu0 0.0
        %569 = vmatpush1.xpose.msra.mxu0 0.0
        %570 = vmatprep.subr.mxu0 0.0
        %571 = vmatpush1.xpose.msra.mxu0 0.0
        %572 = vmatprep.subr.mxu0 0.0
        %573 = vmatpush1.xpose.msra.mxu0 0.0
        %574 = vmatprep.subr.mxu0 0.0
        %575 = vmatpush1.xpose.msra.mxu0 0.0
        %576 = vmatprep.subr.mxu0 0.0
        %577 = vmatpush1.xpose.msra.mxu0 0.0
        %578 = vmatprep.subr.mxu0 0.0
        %579 = vmatpush1.xpose.msra.mxu0 0.0
        %580 = vmatprep.subr.mxu0 0.0
        %581 = vmatpush1.xpose.msra.mxu0 0.0
        %582 = vmatprep.subr.mxu0 0.0
        %583 = vmatpush1.xpose.msra.mxu0 0.0
        %584 = vmatprep.subr.mxu0 0.0
        %585 = vmatpush1.xpose.msra.mxu0 0.0
        %586 = vmatprep.subr.mxu0 0.0
        %587 = vmatpush1.xpose.msra.mxu0 0.0
        %588 = vmatprep.subr.mxu0 0.0
        %589 = vmatpush1.xpose.msra.mxu0 0.0
        %590 = vmatprep.subr.mxu0 0.0
        %591 = vmatpush1.xpose.msra.mxu0 0.0
        %592 = vmatprep.subr.mxu0 0.0
        %593 = vmatpush1.xpose.msra.mxu0 0.0
        %594 = vmatprep.mubr.f32.mxu0 0.0
        %595 = vmatmul.mubr.f32.gmra.mrb[0].mxu0 %v525
        %v596 = vpop.f32.mrb[0].mxu0
        %v597 = vadd.f32 0.0, %v596
        %v598 = vpop.f32.mrb[0].mxu0
        %599 = vdwg.mxu0
        %v601 = vsel %vm447, %v441, 0
        %v604 = vsel %vm447, %v445, 0
        %606 = vmatprep.subr.mxu0 0.0
        %607 = vmatpush1.xpose.msra.mxu0 %v604
        %608 = vmatprep.subr.mxu0 0.0
        %609 = vmatpush1.xpose.msra.mxu0 0.0
        %610 = vmatprep.subr.mxu0 0.0
        %611 = vmatpush1.xpose.msra.mxu0 0.0
        %612 = vmatprep.subr.mxu0 0.0
        %613 = vmatpush1.xpose.msra.mxu0 0.0
        %614 = vmatprep.subr.mxu0 0.0
        %615 = vmatpush1.xpose.msra.mxu0 0.0
        %616 = vmatprep.subr.mxu0 0.0
        %617 = vmatpush1.xpose.msra.mxu0 0.0
        %618 = vmatprep.subr.mxu0 0.0
        %619 = vmatpush1.xpose.msra.mxu0 0.0
        %620 = vmatprep.subr.mxu0 0.0
        %621 = vmatpush1.xpose.msra.mxu0 0.0
        %622 = vmatprep.subr.mxu0 0.0
        %623 = vmatpush1.xpose.msra.mxu0 0.0
        %624 = vmatprep.subr.mxu0 0.0
        %625 = vmatpush1.xpose.msra.mxu0 0.0
        %626 = vmatprep.subr.mxu0 0.0
        %627 = vmatpush1.xpose.msra.mxu0 0.0
        %628 = vmatprep.subr.mxu0 0.0
        %629 = vmatpush1.xpose.msra.mxu0 0.0
        %630 = vmatprep.subr.mxu0 0.0
        %631 = vmatpush1.xpose.msra.mxu0 0.0
        %632 = vmatprep.subr.mxu0 0.0
        %633 = vmatpush1.xpose.msra.mxu0 0.0
        %634 = vmatprep.subr.mxu0 0.0
        %635 = vmatpush1.xpose.msra.mxu0 0.0
        %636 = vmatprep.subr.mxu0 0.0
        %637 = vmatpush1.xpose.msra.mxu0 0.0
        %638 = vmatprep.subr.mxu0 0.0
        %639 = vmatpush1.xpose.msra.mxu0 0.0
        %640 = vmatprep.subr.mxu0 0.0
        %641 = vmatpush1.xpose.msra.mxu0 0.0
        %642 = vmatprep.subr.mxu0 0.0
        %643 = vmatpush1.xpose.msra.mxu0 0.0
        %644 = vmatprep.subr.mxu0 0.0
        %645 = vmatpush1.xpose.msra.mxu0 0.0
        %646 = vmatprep.subr.mxu0 0.0
        %647 = vmatpush1.xpose.msra.mxu0 0.0
        %648 = vmatprep.subr.mxu0 0.0
        %649 = vmatpush1.xpose.msra.mxu0 0.0
        %650 = vmatprep.subr.mxu0 0.0
        %651 = vmatpush1.xpose.msra.mxu0 0.0
        %652 = vmatprep.subr.mxu0 0.0
        %653 = vmatpush1.xpose.msra.mxu0 0.0
        %654 = vmatprep.subr.mxu0 0.0
        %655 = vmatpush1.xpose.msra.mxu0 0.0
        %656 = vmatprep.subr.mxu0 0.0
        %657 = vmatpush1.xpose.msra.mxu0 0.0
        %658 = vmatprep.subr.mxu0 0.0
        %659 = vmatpush1.xpose.msra.mxu0 0.0
        %660 = vmatprep.subr.mxu0 0.0
        %661 = vmatpush1.xpose.msra.mxu0 0.0
        %662 = vmatprep.subr.mxu0 0.0
        %663 = vmatpush1.xpose.msra.mxu0 0.0
        %664 = vmatprep.subr.mxu0 0.0
        %665 = vmatpush1.xpose.msra.mxu0 0.0
        %666 = vmatprep.subr.mxu0 0.0
        %667 = vmatpush1.xpose.msra.mxu0 0.0
        %668 = vmatprep.subr.mxu0 0.0
        %669 = vmatpush1.xpose.msra.mxu0 0.0
        %670 = vmatprep.mubr.f32.mxu0 0.0
        %671 = vmatmul.mubr.f32.gmra.mrb[0].mxu0 %v601
        %v672 = vpop.f32.mrb[0].mxu0
        %v673 = vadd.f32 0.0, %v672
        %v674 = vpop.f32.mrb[0].mxu0
        %675 = vdwg.mxu0
        %v677 = vsel %vm447, %v442, 0
        %v680 = vsel %vm447, %v446, 0
        %682 = vmatprep.subr.mxu0 0.0
        %683 = vmatpush1.xpose.msra.mxu0 %v680
        %684 = vmatprep.subr.mxu0 0.0
        %685 = vmatpush1.xpose.msra.mxu0 0.0
        %686 = vmatprep.subr.mxu0 0.0
        %687 = vmatpush1.xpose.msra.mxu0 0.0
        %688 = vmatprep.subr.mxu0 0.0
        %689 = vmatpush1.xpose.msra.mxu0 0.0
        %690 = vmatprep.subr.mxu0 0.0
        %691 = vmatpush1.xpose.msra.mxu0 0.0
        %692 = vmatprep.subr.mxu0 0.0
        %693 = vmatpush1.xpose.msra.mxu0 0.0
        %694 = vmatprep.subr.mxu0 0.0
        %695 = vmatpush1.xpose.msra.mxu0 0.0
        %696 = vmatprep.subr.mxu0 0.0
        %697 = vmatpush1.xpose.msra.mxu0 0.0
        %698 = vmatprep.subr.mxu0 0.0
        %699 = vmatpush1.xpose.msra.mxu0 0.0
        %700 = vmatprep.subr.mxu0 0.0
        %701 = vmatpush1.xpose.msra.mxu0 0.0
        %702 = vmatprep.subr.mxu0 0.0
        %703 = vmatpush1.xpose.msra.mxu0 0.0
        %704 = vmatprep.subr.mxu0 0.0
        %705 = vmatpush1.xpose.msra.mxu0 0.0
        %706 = vmatprep.subr.mxu0 0.0
        %707 = vmatpush1.xpose.msra.mxu0 0.0
        %708 = vmatprep.subr.mxu0 0.0
        %709 = vmatpush1.xpose.msra.mxu0 0.0
        %710 = vmatprep.subr.mxu0 0.0
        %711 = vmatpush1.xpose.msra.mxu0 0.0
        %712 = vmatprep.subr.mxu0 0.0
        %713 = vmatpush1.xpose.msra.mxu0 0.0
        %714 = vmatprep.subr.mxu0 0.0
        %715 = vmatpush1.xpose.msra.mxu0 0.0
        %716 = vmatprep.subr.mxu0 0.0
        %717 = vmatpush1.xpose.msra.mxu0 0.0
        %718 = vmatprep.subr.mxu0 0.0
        %719 = vmatpush1.xpose.msra.mxu0 0.0
        %720 = vmatprep.subr.mxu0 0.0
        %721 = vmatpush1.xpose.msra.mxu0 0.0
        %722 = vmatprep.subr.mxu0 0.0
        %723 = vmatpush1.xpose.msra.mxu0 0.0
        %724 = vmatprep.subr.mxu0 0.0
        %725 = vmatpush1.xpose.msra.mxu0 0.0
        %726 = vmatprep.subr.mxu0 0.0
        %727 = vmatpush1.xpose.msra.mxu0 0.0
        %728 = vmatprep.subr.mxu0 0.0
        %729 = vmatpush1.xpose.msra.mxu0 0.0
        %730 = vmatprep.subr.mxu0 0.0
        %731 = vmatpush1.xpose.msra.mxu0 0.0
        %732 = vmatprep.subr.mxu0 0.0
        %733 = vmatpush1.xpose.msra.mxu0 0.0
        %734 = vmatprep.subr.mxu0 0.0
        %735 = vmatpush1.xpose.msra.mxu0 0.0
        %736 = vmatprep.subr.mxu0 0.0
        %737 = vmatpush1.xpose.msra.mxu0 0.0
        %738 = vmatprep.subr.mxu0 0.0
        %739 = vmatpush1.xpose.msra.mxu0 0.0
        %740 = vmatprep.subr.mxu0 0.0
        %741 = vmatpush1.xpose.msra.mxu0 0.0
        %742 = vmatprep.subr.mxu0 0.0
        %743 = vmatpush1.xpose.msra.mxu0 0.0
        %744 = vmatprep.subr.mxu0 0.0
        %745 = vmatpush1.xpose.msra.mxu0 0.0
        %746 = vmatprep.mubr.f32.mxu0 0.0
        %747 = vmatmul.mubr.f32.gmra.mrb[0].mxu0 %v677
        %v748 = vpop.f32.mrb[0].mxu0
        %v749 = vadd.f32 0.0, %v748
        %v750 = vpop.f32.mrb[0].mxu0
        %751 = vdwg.mxu0
        %v752 = vld [vmem:[%s398] sm:$0xff]
        %v753 = vld [vmem:[%s398 + $0x8] sm:$0xff]
        %v754 = vld [vmem:[%s398 + $0x10] sm:$0xff]
        %v755 = vld [vmem:[%s398 + $0x18] sm:$0xff]
        %vm756 = vcmp.ne.s32.totalorder %v752, 0
        %vm757 = vcmp.ne.s32.totalorder %v753, 0
        %vm758 = vcmp.ne.s32.totalorder %v754, 0
        %vm759 = vcmp.ne.s32.totalorder %v755, 0
        %v760 = vld [vmem:[%s406] sm:$0x1]
        %v761 = vld [vmem:[%s406 + $0x1] sm:$0x1]
        %v762 = vld [vmem:[%s406 + $0x2] sm:$0x1]
        %v763 = vld [vmem:[%s406 + $0x3] sm:$0x1]
        %vm764 = vcmp.ne.s32.totalorder %v760, 0
        %vm765 = vcmp.ne.s32.totalorder %v761, 0
        %vm766 = vcmp.ne.s32.totalorder %v762, 0
        %vm767 = vcmp.ne.s32.totalorder %v763, 0
        %v768 = vsel %vm756, 1, 0
        %v769 = vsel %vm757, 1, 0
        %v770 = vsel %vm758, 1, 0
        %v771 = vsel %vm759, 1, 0
        %772 = vset.pattern.permute.xlu0 0
        %773 = vperm.xlu0 %772, %v768
        %v774 = vpop.permute.xlu0 %773
        %775 = vset.pattern.permute.xlu0 0
        %776 = vperm.xlu0 %775, %v769
        %v777 = vpop.permute.xlu0 %776
        %778 = vset.pattern.permute.xlu0 0
        %779 = vperm.xlu0 %778, %v770
        %v780 = vpop.permute.xlu0 %779
        %781 = vset.pattern.permute.xlu0 0
        %782 = vperm.xlu0 %781, %v771
        %v783 = vpop.permute.xlu0 %782
        %vm784 = vcmp.eq.s32.totalorder %v774, 1
        %vm785 = vcmp.eq.s32.totalorder %v777, 1
        %vm786 = vcmp.eq.s32.totalorder %v780, 1
        %vm787 = vcmp.eq.s32.totalorder %v783, 1
        %v788 = vsel %vm764, 1, 0
        %v789 = vsel %vm765, 1, 0
        %v790 = vsel %vm766, 1, 0
        %v791 = vsel %vm767, 1, 0
        %v792 = vlaneseq
        %v793 = vshrl.u32 %v792, 7
        %v794 = vsub.s32 0, %v793
        %v795 = vrot.slane %v788, %v794
        %v796 = vlaneseq
        %v797 = vshrl.u32 %v796, 7
        %v798 = vsub.s32 0, %v797
        %v799 = vrot.slane %v789, %v798
        %v800 = vlaneseq
        %v801 = vshrl.u32 %v800, 7
        %v802 = vsub.s32 0, %v801
        %v803 = vrot.slane %v790, %v802
        %v804 = vlaneseq
        %v805 = vshrl.u32 %v804, 7
        %v806 = vsub.s32 0, %v805
        %v807 = vrot.slane %v791, %v806
        %vm808 = vcmp.eq.s32.totalorder %v795, 1
        %vm809 = vcmp.eq.s32.totalorder %v799, 1
        %vm810 = vcmp.eq.s32.totalorder %v803, 1
        %vm811 = vcmp.eq.s32.totalorder %v807, 1
        %vm812 = vmand %vm784, %vm808
        %vm813 = vmand %vm785, %vm809
        %vm814 = vmand %vm786, %vm810
        %vm815 = vmand %vm787, %vm811
        %v816 = vsel %vm812, -2.3819763e+38, %v521
        %v817 = vsel %vm813, -2.3819763e+38, %v597
        %v818 = vsel %vm814, -2.3819763e+38, %v673
        %v819 = vsel %vm815, -2.3819763e+38, %v749
        %v820 = vld [vmem:[#allocation2] sm:$0xff]
        %v821 = vld [vmem:[#allocation2 + $0x8] sm:$0xff]
        %v822 = vld [vmem:[#allocation2 + $0x10] sm:$0xff]
        %v823 = vld [vmem:[#allocation2 + $0x18] sm:$0xff]
        %vm824 = vcmask 64512
        %v825 = vsel %vm824, %v816, -inf
        %826 = vmax.xlane.f32.xlu0 %v825
        %v827 = vpop.xlane.xlu0 %826
        %v828 = vsel %vm824, %v817, -inf
        %829 = vmax.xlane.f32.xlu0 %v828
        %v830 = vpop.xlane.xlu0 %829
        %v831 = vsel %vm824, %v818, -inf
        %832 = vmax.xlane.f32.xlu0 %v831
        %v833 = vpop.xlane.xlu0 %832
        %v834 = vsel %vm824, %v819, -inf
        %835 = vmax.xlane.f32.xlu0 %v834
        %v836 = vpop.xlane.xlu0 %835
        %v837 = vmax.f32 %v820, %v827
        %v838 = vmax.f32 %v821, %v830
        %v839 = vmax.f32 %v822, %v833
        %v840 = vmax.f32 %v823, %v836
        %v841 = vsub.f32 %v820, %v837
        %v842 = vsub.f32 %v821, %v838
        %v843 = vsub.f32 %v822, %v839
        %v844 = vsub.f32 %v823, %v840
        %v845 = vmul.f32 %v841, 1.442695
        %v846 = vpow.pop %v845
        %v847 = vmul.f32 %v842, 1.442695
        %v848 = vpow.pop %v847
        %v849 = vmul.f32 %v843, 1.442695
        %v850 = vpow.pop %v849
        %v851 = vmul.f32 %v844, 1.442695
        %v852 = vpow.pop %v851
        %854 = vset.pattern.permute.xlu0 0
        %855 = vperm.xlu0 %854, %v837
        %v856 = vpop.permute.xlu0 %855
        %859 = vset.pattern.permute.xlu0 0
        %860 = vperm.xlu0 %859, %v838
        %v861 = vpop.permute.xlu0 %860
        %864 = vset.pattern.permute.xlu0 0
        %865 = vperm.xlu0 %864, %v839
        %v866 = vpop.permute.xlu0 %865
        %869 = vset.pattern.permute.xlu0 0
        %870 = vperm.xlu0 %869, %v840
        %v871 = vpop.permute.xlu0 %870
        %v873 = vsub.f32 %v816, %v856
        %v874 = vsub.f32 %v817, %v861
        %v875 = vsub.f32 %v818, %v866
        %v876 = vsub.f32 %v819, %v871
        %v877 = vmul.f32 %v873, 1.442695
        %v878 = vpow.pop %v877
        %v879 = vmul.f32 %v874, 1.442695
        %v880 = vpow.pop %v879
        %v881 = vmul.f32 %v875, 1.442695
        %v882 = vpow.pop %v881
        %v883 = vmul.f32 %v876, 1.442695
        %v884 = vpow.pop %v883
        %v885 = vld [vmem:[#allocation3] sm:$0xff]
        %v886 = vld [vmem:[#allocation3 + $0x8] sm:$0xff]
        %v887 = vld [vmem:[#allocation3 + $0x10] sm:$0xff]
        %v888 = vld [vmem:[#allocation3 + $0x18] sm:$0xff]
        %v889 = vmul.f32 %v846, %v885
        %v890 = vmul.f32 %v848, %v886
        %v891 = vmul.f32 %v850, %v887
        %v892 = vmul.f32 %v852, %v888
        %v893 = vsel %vm824, %v878, 0.0
        %894 = vadd.xlane.f32.xlu0 %v893
        %v895 = vpop.xlane.xlu0 %894
        %v896 = vsel %vm824, %v880, 0.0
        %897 = vadd.xlane.f32.xlu0 %v896
        %v898 = vpop.xlane.xlu0 %897
        %v899 = vsel %vm824, %v882, 0.0
        %900 = vadd.xlane.f32.xlu0 %v899
        %v901 = vpop.xlane.xlu0 %900
        %v902 = vsel %vm824, %v884, 0.0
        %903 = vadd.xlane.f32.xlu0 %v902
        %v904 = vpop.xlane.xlu0 %903
        %v905 = vadd.f32 %v889, %v895
        %v906 = vadd.f32 %v890, %v898
        %v907 = vadd.f32 %v891, %v901
        %v908 = vadd.f32 %v892, %v904
        %vm909 = vcmask 7168
        %910 = vst.msk [vmem:[#allocation3] sm:$0xff] %vm909, %v905
        %911 = vst.msk [vmem:[#allocation3 + $0x8] sm:$0xff] %vm909, %v906
        %912 = vst.msk [vmem:[#allocation3 + $0x10] sm:$0xff] %vm909, %v907
        %913 = vst.msk [vmem:[#allocation3 + $0x18] sm:$0xff] %vm909, %v908
        %v914 = vld [vmem:[#allocation4] sm:$0xff]
        %v915 = vld [vmem:[#allocation4 + $0x8] sm:$0xff]
        %v916 = vld [vmem:[#allocation4 + $0x10] sm:$0xff]
        %v917 = vld [vmem:[#allocation4 + $0x18] sm:$0xff]
        %919 = vset.pattern.permute.xlu0 0
        %920 = vperm.xlu0 %919, %v846
        %v921 = vpop.permute.xlu0 %920
        %924 = vset.pattern.permute.xlu0 0
        %925 = vperm.xlu0 %924, %v848
        %v926 = vpop.permute.xlu0 %925
        %929 = vset.pattern.permute.xlu0 0
        %930 = vperm.xlu0 %929, %v850
        %v931 = vpop.permute.xlu0 %930
        %934 = vset.pattern.permute.xlu0 0
        %935 = vperm.xlu0 %934, %v852
        %v936 = vpop.permute.xlu0 %935
        %v938 = vmul.f32 %v921, %v914
        %v939 = vmul.f32 %v926, %v915
        %v940 = vmul.f32 %v931, %v916
        %v941 = vmul.f32 %v936, %v917
        %v942 = vld [vmem:[%s325] sm:$0xff]
        %v943 = vld [vmem:[%s325 + $0x8] sm:$0xff]
        %v944 = vld [vmem:[%s325 + $0x10] sm:$0xff]
        %v945 = vld [vmem:[%s325 + $0x18] sm:$0xff]
        %v947 = vsel %vm824, %v878, 0
        %949 = vmatprep.subr.mxu0 0.0
        %950 = vmatpush1.msra.mxu0 %v942
        %951 = vmatprep.subr.mxu0 0.0
        %952 = vmatpush1.msra.mxu0 0.0
        %953 = vmatprep.subr.mxu0 0.0
        %954 = vmatpush1.msra.mxu0 0.0
        %955 = vmatprep.subr.mxu0 0.0
        %956 = vmatpush1.msra.mxu0 0.0
        %957 = vmatprep.subr.mxu0 0.0
        %958 = vmatpush1.msra.mxu0 0.0
        %959 = vmatprep.subr.mxu0 0.0
        %960 = vmatpush1.msra.mxu0 0.0
        %961 = vmatprep.subr.mxu0 0.0
        %962 = vmatpush1.msra.mxu0 0.0
        %963 = vmatprep.subr.mxu0 0.0
        %964 = vmatpush1.msra.mxu0 0.0
        %965 = vmatprep.subr.mxu0 0.0
        %966 = vmatpush1.msra.mxu0 0.0
        %967 = vmatprep.subr.mxu0 0.0
        %968 = vmatpush1.msra.mxu0 0.0
        %969 = vmatprep.subr.mxu0 0.0
        %970 = vmatpush1.msra.mxu0 0.0
        %971 = vmatprep.subr.mxu0 0.0
        %972 = vmatpush1.msra.mxu0 0.0
        %973 = vmatprep.subr.mxu0 0.0
        %974 = vmatpush1.msra.mxu0 0.0
        %975 = vmatprep.subr.mxu0 0.0
        %976 = vmatpush1.msra.mxu0 0.0
        %977 = vmatprep.subr.mxu0 0.0
        %978 = vmatpush1.msra.mxu0 0.0
        %979 = vmatprep.subr.mxu0 0.0
        %980 = vmatpush1.msra.mxu0 0.0
        %981 = vmatprep.subr.mxu0 0.0
        %982 = vmatpush1.msra.mxu0 0.0
        %983 = vmatprep.subr.mxu0 0.0
        %984 = vmatpush1.msra.mxu0 0.0
        %985 = vmatprep.subr.mxu0 0.0
        %986 = vmatpush1.msra.mxu0 0.0
        %987 = vmatprep.subr.mxu0 0.0
        %988 = vmatpush1.msra.mxu0 0.0
        %989 = vmatprep.subr.mxu0 0.0
        %990 = vmatpush1.msra.mxu0 0.0
        %991 = vmatprep.subr.mxu0 0.0
        %992 = vmatpush1.msra.mxu0 0.0
        %993 = vmatprep.subr.mxu0 0.0
        %994 = vmatpush1.msra.mxu0 0.0
        %995 = vmatprep.subr.mxu0 0.0
        %996 = vmatpush1.msra.mxu0 0.0
        %997 = vmatprep.subr.mxu0 0.0
        %998 = vmatpush1.msra.mxu0 0.0
        %999 = vmatprep.subr.mxu0 0.0
        %1000 = vmatpush1.msra.mxu0 0.0
        %1001 = vmatprep.subr.mxu0 0.0
        %1002 = vmatpush1.msra.mxu0 0.0
        %1003 = vmatprep.subr.mxu0 0.0
        %1004 = vmatpush1.msra.mxu0 0.0
        %1005 = vmatprep.subr.mxu0 0.0
        %1006 = vmatpush1.msra.mxu0 0.0
        %1007 = vmatprep.subr.mxu0 0.0
        %1008 = vmatpush1.msra.mxu0 0.0
        %1009 = vmatprep.subr.mxu0 0.0
        %1010 = vmatpush1.msra.mxu0 0.0
        %1011 = vmatprep.subr.mxu0 0.0
        %1012 = vmatpush1.msra.mxu0 0.0
        %1013 = vmatprep.mubr.f32.mxu0 0.0
        %1014 = vmatmul.mubr.f32.gmra.mrb[0].mxu0 %v947
        %v1015 = vpop.f32.mrb[0].mxu0
        %v1016 = vadd.f32 0.0, %v1015
        %v1017 = vpop.f32.mrb[0].mxu0
        %1018 = vdwg.mxu0
        %v1020 = vsel %vm824, %v880, 0
        %1022 = vmatprep.subr.mxu0 0.0
        %1023 = vmatpush1.msra.mxu0 %v943
        %1024 = vmatprep.subr.mxu0 0.0
        %1025 = vmatpush1.msra.mxu0 0.0
        %1026 = vmatprep.subr.mxu0 0.0
        %1027 = vmatpush1.msra.mxu0 0.0
        %1028 = vmatprep.subr.mxu0 0.0
        %1029 = vmatpush1.msra.mxu0 0.0
        %1030 = vmatprep.subr.mxu0 0.0
        %1031 = vmatpush1.msra.mxu0 0.0
        %1032 = vmatprep.subr.mxu0 0.0
        %1033 = vmatpush1.msra.mxu0 0.0
        %1034 = vmatprep.subr.mxu0 0.0
        %1035 = vmatpush1.msra.mxu0 0.0
        %1036 = vmatprep.subr.mxu0 0.0
        %1037 = vmatpush1.msra.mxu0 0.0
        %1038 = vmatprep.subr.mxu0 0.0
        %1039 = vmatpush1.msra.mxu0 0.0
        %1040 = vmatprep.subr.mxu0 0.0
        %1041 = vmatpush1.msra.mxu0 0.0
        %1042 = vmatprep.subr.mxu0 0.0
        %1043 = vmatpush1.msra.mxu0 0.0
        %1044 = vmatprep.subr.mxu0 0.0
        %1045 = vmatpush1.msra.mxu0 0.0
        %1046 = vmatprep.subr.mxu0 0.0
        %1047 = vmatpush1.msra.mxu0 0.0
        %1048 = vmatprep.subr.mxu0 0.0
        %1049 = vmatpush1.msra.mxu0 0.0
        %1050 = vmatprep.subr.mxu0 0.0
        %1051 = vmatpush1.msra.mxu0 0.0
        %1052 = vmatprep.subr.mxu0 0.0
        %1053 = vmatpush1.msra.mxu0 0.0
        %1054 = vmatprep.subr.mxu0 0.0
        %1055 = vmatpush1.msra.mxu0 0.0
        %1056 = vmatprep.subr.mxu0 0.0
        %1057 = vmatpush1.msra.mxu0 0.0
        %1058 = vmatprep.subr.mxu0 0.0
        %1059 = vmatpush1.msra.mxu0 0.0
        %1060 = vmatprep.subr.mxu0 0.0
        %1061 = vmatpush1.msra.mxu0 0.0
        %1062 = vmatprep.subr.mxu0 0.0
        %1063 = vmatpush1.msra.mxu0 0.0
        %1064 = vmatprep.subr.mxu0 0.0
        %1065 = vmatpush1.msra.mxu0 0.0
        %1066 = vmatprep.subr.mxu0 0.0
        %1067 = vmatpush1.msra.mxu0 0.0
        %1068 = vmatprep.subr.mxu0 0.0
        %1069 = vmatpush1.msra.mxu0 0.0
        %1070 = vmatprep.subr.mxu0 0.0
        %1071 = vmatpush1.msra.mxu0 0.0
        %1072 = vmatprep.subr.mxu0 0.0
        %1073 = vmatpush1.msra.mxu0 0.0
        %1074 = vmatprep.subr.mxu0 0.0
        %1075 = vmatpush1.msra.mxu0 0.0
        %1076 = vmatprep.subr.mxu0 0.0
        %1077 = vmatpush1.msra.mxu0 0.0
        %1078 = vmatprep.subr.mxu0 0.0
        %1079 = vmatpush1.msra.mxu0 0.0
        %1080 = vmatprep.subr.mxu0 0.0
        %1081 = vmatpush1.msra.mxu0 0.0
        %1082 = vmatprep.subr.mxu0 0.0
        %1083 = vmatpush1.msra.mxu0 0.0
        %1084 = vmatprep.subr.mxu0 0.0
        %1085 = vmatpush1.msra.mxu0 0.0
        %1086 = vmatprep.mubr.f32.mxu0 0.0
        %1087 = vmatmul.mubr.f32.gmra.mrb[0].mxu0 %v1020
        %v1088 = vpop.f32.mrb[0].mxu0
        %v1089 = vadd.f32 0.0, %v1088
        %v1090 = vpop.f32.mrb[0].mxu0
        %1091 = vdwg.mxu0
        %v1093 = vsel %vm824, %v882, 0
        %1095 = vmatprep.subr.mxu0 0.0
        %1096 = vmatpush1.msra.mxu0 %v944
        %1097 = vmatprep.subr.mxu0 0.0
        %1098 = vmatpush1.msra.mxu0 0.0
        %1099 = vmatprep.subr.mxu0 0.0
        %1100 = vmatpush1.msra.mxu0 0.0
        %1101 = vmatprep.subr.mxu0 0.0
        %1102 = vmatpush1.msra.mxu0 0.0
        %1103 = vmatprep.subr.mxu0 0.0
        %1104 = vmatpush1.msra.mxu0 0.0
        %1105 = vmatprep.subr.mxu0 0.0
        %1106 = vmatpush1.msra.mxu0 0.0
        %1107 = vmatprep.subr.mxu0 0.0
        %1108 = vmatpush1.msra.mxu0 0.0
        %1109 = vmatprep.subr.mxu0 0.0
        %1110 = vmatpush1.msra.mxu0 0.0
        %1111 = vmatprep.subr.mxu0 0.0
        %1112 = vmatpush1.msra.mxu0 0.0
        %1113 = vmatprep.subr.mxu0 0.0
        %1114 = vmatpush1.msra.mxu0 0.0
        %1115 = vmatprep.subr.mxu0 0.0
        %1116 = vmatpush1.msra.mxu0 0.0
        %1117 = vmatprep.subr.mxu0 0.0
        %1118 = vmatpush1.msra.mxu0 0.0
        %1119 = vmatprep.subr.mxu0 0.0
        %1120 = vmatpush1.msra.mxu0 0.0
        %1121 = vmatprep.subr.mxu0 0.0
        %1122 = vmatpush1.msra.mxu0 0.0
        %1123 = vmatprep.subr.mxu0 0.0
        %1124 = vmatpush1.msra.mxu0 0.0
        %1125 = vmatprep.subr.mxu0 0.0
        %1126 = vmatpush1.msra.mxu0 0.0
        %1127 = vmatprep.subr.mxu0 0.0
        %1128 = vmatpush1.msra.mxu0 0.0
        %1129 = vmatprep.subr.mxu0 0.0
        %1130 = vmatpush1.msra.mxu0 0.0
        %1131 = vmatprep.subr.mxu0 0.0
        %1132 = vmatpush1.msra.mxu0 0.0
        %1133 = vmatprep.subr.mxu0 0.0
        %1134 = vmatpush1.msra.mxu0 0.0
        %1135 = vmatprep.subr.mxu0 0.0
        %1136 = vmatpush1.msra.mxu0 0.0
        %1137 = vmatprep.subr.mxu0 0.0
        %1138 = vmatpush1.msra.mxu0 0.0
        %1139 = vmatprep.subr.mxu0 0.0
        %1140 = vmatpush1.msra.mxu0 0.0
        %1141 = vmatprep.subr.mxu0 0.0
        %1142 = vmatpush1.msra.mxu0 0.0
        %1143 = vmatprep.subr.mxu0 0.0
        %1144 = vmatpush1.msra.mxu0 0.0
        %1145 = vmatprep.subr.mxu0 0.0
        %1146 = vmatpush1.msra.mxu0 0.0
        %1147 = vmatprep.subr.mxu0 0.0
        %1148 = vmatpush1.msra.mxu0 0.0
        %1149 = vmatprep.subr.mxu0 0.0
        %1150 = vmatpush1.msra.mxu0 0.0
        %1151 = vmatprep.subr.mxu0 0.0
        %1152 = vmatpush1.msra.mxu0 0.0
        %1153 = vmatprep.subr.mxu0 0.0
        %1154 = vmatpush1.msra.mxu0 0.0
        %1155 = vmatprep.subr.mxu0 0.0
        %1156 = vmatpush1.msra.mxu0 0.0
        %1157 = vmatprep.subr.mxu0 0.0
        %1158 = vmatpush1.msra.mxu0 0.0
        %1159 = vmatprep.mubr.f32.mxu0 0.0
        %1160 = vmatmul.mubr.f32.gmra.mrb[0].mxu0 %v1093
        %v1161 = vpop.f32.mrb[0].mxu0
        %v1162 = vadd.f32 0.0, %v1161
        %v1163 = vpop.f32.mrb[0].mxu0
        %1164 = vdwg.mxu0
        %v1166 = vsel %vm824, %v884, 0
        %1168 = vmatprep.subr.mxu0 0.0
        %1169 = vmatpush1.msra.mxu0 %v945
        %1170 = vmatprep.subr.mxu0 0.0
        %1171 = vmatpush1.msra.mxu0 0.0
        %1172 = vmatprep.subr.mxu0 0.0
        %1173 = vmatpush1.msra.mxu0 0.0
        %1174 = vmatprep.subr.mxu0 0.0
        %1175 = vmatpush1.msra.mxu0 0.0
        %1176 = vmatprep.subr.mxu0 0.0
        %1177 = vmatpush1.msra.mxu0 0.0
        %1178 = vmatprep.subr.mxu0 0.0
        %1179 = vmatpush1.msra.mxu0 0.0
        %1180 = vmatprep.subr.mxu0 0.0
        %1181 = vmatpush1.msra.mxu0 0.0
        %1182 = vmatprep.subr.mxu0 0.0
        %1183 = vmatpush1.msra.mxu0 0.0
        %1184 = vmatprep.subr.mxu0 0.0
        %1185 = vmatpush1.msra.mxu0 0.0
        %1186 = vmatprep.subr.mxu0 0.0
        %1187 = vmatpush1.msra.mxu0 0.0
        %1188 = vmatprep.subr.mxu0 0.0
        %1189 = vmatpush1.msra.mxu0 0.0
        %1190 = vmatprep.subr.mxu0 0.0
        %1191 = vmatpush1.msra.mxu0 0.0
        %1192 = vmatprep.subr.mxu0 0.0
        %1193 = vmatpush1.msra.mxu0 0.0
        %1194 = vmatprep.subr.mxu0 0.0
        %1195 = vmatpush1.msra.mxu0 0.0
        %1196 = vmatprep.subr.mxu0 0.0
        %1197 = vmatpush1.msra.mxu0 0.0
        %1198 = vmatprep.subr.mxu0 0.0
        %1199 = vmatpush1.msra.mxu0 0.0
        %1200 = vmatprep.subr.mxu0 0.0
        %1201 = vmatpush1.msra.mxu0 0.0
        %1202 = vmatprep.subr.mxu0 0.0
        %1203 = vmatpush1.msra.mxu0 0.0
        %1204 = vmatprep.subr.mxu0 0.0
        %1205 = vmatpush1.msra.mxu0 0.0
        %1206 = vmatprep.subr.mxu0 0.0
        %1207 = vmatpush1.msra.mxu0 0.0
        %1208 = vmatprep.subr.mxu0 0.0
        %1209 = vmatpush1.msra.mxu0 0.0
        %1210 = vmatprep.subr.mxu0 0.0
        %1211 = vmatpush1.msra.mxu0 0.0
        %1212 = vmatprep.subr.mxu0 0.0
        %1213 = vmatpush1.msra.mxu0 0.0
        %1214 = vmatprep.subr.mxu0 0.0
        %1215 = vmatpush1.msra.mxu0 0.0
        %1216 = vmatprep.subr.mxu0 0.0
        %1217 = vmatpush1.msra.mxu0 0.0
        %1218 = vmatprep.subr.mxu0 0.0
        %1219 = vmatpush1.msra.mxu0 0.0
        %1220 = vmatprep.subr.mxu0 0.0
        %1221 = vmatpush1.msra.mxu0 0.0
        %1222 = vmatprep.subr.mxu0 0.0
        %1223 = vmatpush1.msra.mxu0 0.0
        %1224 = vmatprep.subr.mxu0 0.0
        %1225 = vmatpush1.msra.mxu0 0.0
        %1226 = vmatprep.subr.mxu0 0.0
        %1227 = vmatpush1.msra.mxu0 0.0
        %1228 = vmatprep.subr.mxu0 0.0
        %1229 = vmatpush1.msra.mxu0 0.0
        %1230 = vmatprep.subr.mxu0 0.0
        %1231 = vmatpush1.msra.mxu0 0.0
        %1232 = vmatprep.mubr.f32.mxu0 0.0
        %1233 = vmatmul.mubr.f32.gmra.mrb[0].mxu0 %v1166
        %v1234 = vpop.f32.mrb[0].mxu0
        %v1235 = vadd.f32 0.0, %v1234
        %v1236 = vpop.f32.mrb[0].mxu0
        %1237 = vdwg.mxu0
        %v1238 = vadd.f32 %v938, %v1016
        %v1239 = vadd.f32 %v939, %v1089
        %v1240 = vadd.f32 %v940, %v1162
        %v1241 = vadd.f32 %v941, %v1235
        %1242 = vst.msk [vmem:[#allocation4] sm:$0xff] %vm447, %v1238
        %1243 = vst.msk [vmem:[#allocation4 + $0x8] sm:$0xff] %vm447, %v1239
        %1244 = vst.msk [vmem:[#allocation4 + $0x10] sm:$0xff] %vm447, %v1240
        %1245 = vst.msk [vmem:[#allocation4 + $0x18] sm:$0xff] %vm447, %v1241
        %1246 = vst.msk [vmem:[#allocation2] sm:$0xff] %vm909, %v837
        %1247 = vst.msk [vmem:[#allocation2 + $0x8] sm:$0xff] %vm909, %v838
        %1248 = vst.msk [vmem:[#allocation2 + $0x10] sm:$0xff] %vm909, %v839
        %1249 = vst.msk [vmem:[#allocation2 + $0x18] sm:$0xff] %vm909, %v840
        // Predicated region
        $region53: #{tpu_custom_call.1} parent=39 // pred_check
          %p1250 = pneg %p409
        $region54: #{tpu_custom_call.1} parent=39 // pred_check_branch
          %1252 = sbr.rel (%p1250) target = $region56
        $region55: #{tpu_custom_call.1} parent=39 // pred_region
          %v1253 = vld [vmem:[#allocation3] sm:$0xff]
          %v1254 = vld [vmem:[#allocation3 + $0x8] sm:$0xff]
          %v1255 = vld [vmem:[#allocation3 + $0x10] sm:$0xff]
          %v1256 = vld [vmem:[#allocation3 + $0x18] sm:$0xff]
          %v1257 = vrcp.pop %v1253
          %v1258 = vmul.f32 1.0, %v1257
          %v1259 = vrcp.pop %v1254
          %v1260 = vmul.f32 1.0, %v1259
          %v1261 = vrcp.pop %v1255
          %v1262 = vmul.f32 1.0, %v1261
          %v1263 = vrcp.pop %v1256
          %v1264 = vmul.f32 1.0, %v1263
          %v1265 = vld [vmem:[#allocation4] sm:$0xff]
          %v1266 = vld [vmem:[#allocation4 + $0x8] sm:$0xff]
          %v1267 = vld [vmem:[#allocation4 + $0x10] sm:$0xff]
          %v1268 = vld [vmem:[#allocation4 + $0x18] sm:$0xff]
          %1270 = vset.pattern.permute.xlu0 0
          %1271 = vperm.xlu0 %1270, %v1258
          %v1272 = vpop.permute.xlu0 %1271
          %1275 = vset.pattern.permute.xlu0 0
          %1276 = vperm.xlu0 %1275, %v1260
          %v1277 = vpop.permute.xlu0 %1276
          %1280 = vset.pattern.permute.xlu0 0
          %1281 = vperm.xlu0 %1280, %v1262
          %v1282 = vpop.permute.xlu0 %1281
          %1285 = vset.pattern.permute.xlu0 0
          %1286 = vperm.xlu0 %1285, %v1264
          %v1287 = vpop.permute.xlu0 %1286
          %v1289 = vmul.f32 %v1265, %v1272
          %v1290 = vmul.f32 %v1266, %v1277
          %v1291 = vmul.f32 %v1267, %v1282
          %v1292 = vmul.f32 %v1268, %v1287
          %1293 = vst.msk [vmem:[%s379] sm:$0xff] %vm447, %v1289
          %1294 = vst.msk [vmem:[%s379 + $0x8] sm:$0xff] %vm447, %v1290
          %1295 = vst.msk [vmem:[%s379 + $0x10] sm:$0xff] %vm447, %v1291
          %1296 = vst.msk [vmem:[%s379 + $0x18] sm:$0xff] %vm447, %v1292
        $region56: #{tpu_custom_call.1} parent=39 // pred_fallthru
          _
        %s1297 = sand.u32 %s194, 1
        %s1298 = scalar_lea.sflag [#allocation8], %s1297
        %s1299 = sand.u32 %s194, 1
        %s1300 = smul.addr %s1299, 32
        %s1301 = scalar_lea.vmem [#allocation11], %s1300
        // Predicated region
        $region57: #{tpu_custom_call.1} parent=39 // pred_check
          %p1302 = pneg %p204
        $region58: #{tpu_custom_call.1} parent=39 // pred_check_branch
          %1304 = sbr.rel (%p1302) target = $region60
        $region59: #{tpu_custom_call.1} parent=39 // pred_region
          %s1305 = smul.u32 4, %s30
          %s1307 = ssub.s32 512, 512
          %1308 = vsyncadd %s1298, %s1307
          %s1309 = sadd.s32 %s31, %s1305
          %s1310 = smul.addr %s1309, 128
          %s1311 = scalar_lea.hbm %s5, %s1310
          %s1312 = sshll.u32 %s1301, 4
          %s1313 = int_to_ptr.vmem [resolvable:$true] %s1312
          %1318 = dma.vmem_to_hbm [thread:$0]  %s1313, 512, %s1311, %s1298, 128, 128, 8
        $region60: #{tpu_custom_call.1} parent=39 // pred_fallthru
          _
      $region40: #{tpu_custom_call.1} parent=5 // pred_fallthru
        _
      %p1319 = scmp.le.s32.totalorder 2, %s20
      // Predicated region
      $region61: #{tpu_custom_call.1} parent=5 // pred_check
        %p1320 = pneg %p1319
      $region62: #{tpu_custom_call.1} parent=5 // pred_check_branch
        %1322 = sbr.rel (%p1320) target = $region64
      $region63: #{tpu_custom_call.1} parent=5 // pred_region
        %s1323 = ssub.s32 %s20, 2
        // Predicated region
        $region65: #{tpu_custom_call.1} parent=63 // pred_check
          %p1324 = pneg %p210
        $region66: #{tpu_custom_call.1} parent=63 // pred_check_branch
          %1326 = sbr.rel (%p1324) target = $region68
        $region67: #{tpu_custom_call.1} parent=63 // pred_region
          %s1327 = sand.u32 %s195, 1
          %s1328 = scalar_lea.sflag [#allocation8], %s1327
          %s1329 = sand.u32 %s195, 1
          %s1330 = smul.addr %s1329, 32
          %s1331 = scalar_lea.vmem [#allocation11], %s1330
          %1332 = dma.done %s1328, 512
        $region68: #{tpu_custom_call.1} parent=63 // pred_fallthru
          _
      $region64: #{tpu_custom_call.1} parent=5 // pred_fallthru
        _
    $region6: #{tpu_custom_call.1} parent=1 // loop_footer
      %s24 = sadd.s32 1, %s20
    $region7: #{tpu_custom_call.1} parent=1 // loop_footer_branch
      %19 = sbr.rel target = $region3
    $region8: #{tpu_custom_call.1} parent=1 // loop_exit
      _
    %1333 = vsyncpa [#allocation7], 1
    %s1334 = scalar_lea.sflag [#allocation7], 1
    %1335 = vsyncpa %s1334, 1
    %1336 = vsyncpa [#allocation10], 1
    %s1337 = scalar_lea.sflag [#allocation10], 1
    %1338 = vsyncpa %s1337, 1
    %1339 = vsyncpa [#allocation8], 1
    %s1340 = scalar_lea.sflag [#allocation8], 1
    %1341 = vsyncpa %s1340, 1

</llo_original>
